<compile_context>
chip_gen: v5e
topology: v5e:2x2
jax: 0.10.0
libtpu: 0.0.40
codegen_flags: <defaults>
</compile_context>

<pallas_src>
import math

import jax
import jax.numpy as jnp
from jax.experimental import pallas as pl
from jax.experimental.pallas import tpu as pltpu

# ---------------- small Phi-like config ----------------
HIDDEN = 64          # config.hidden_size
NUM_HEADS = 4        # config.num_attention_heads
HEAD_DIM = HIDDEN // NUM_HEADS          # 16
NUM_KV_HEADS = 4     # config.num_key_value_heads (== num_heads -> n_rep == 1)
INTERMEDIATE = 128   # config.intermediate_size
PARTIAL_ROTARY = 0.5
ROT_DIM = int(HEAD_DIM * PARTIAL_ROTARY)  # rotary_ndims = 8
LN_EPS = 1e-5
ROPE_THETA = 10000.0
BATCH = 2
SEQ = 8
DTYPE = jnp.float32

HP = 128                      # per-head lane-padded width (one full lane tile)
HW = NUM_HEADS * HP           # 512: width of each padded Q/K/V segment


# ---------------- fused decoder-layer Pallas kernel (one grid step == one batch) ----------------
def decoder_layer_kernel(x_ref, lnw_ref, lnb_ref, wqkv_ref, bqkv_ref,
                         cos_ref, sin_ref, mask_ref,
                         wd_ref, bd_ref, w1_ref, b1_ref, w2_ref, b2_ref,
                         o_ref):
    f32 = jnp.float32
    bf16 = jnp.bfloat16
    S = x_ref.shape[1]

    x = x_ref[0].astype(f32)                                    # (S, H)  residual

    # ---- input LayerNorm (fp32) ----
    mean = jnp.mean(x, axis=-1, keepdims=True)
    var = jnp.mean((x - mean) ** 2, axis=-1, keepdims=True)
    hs = (x - mean) * jax.lax.rsqrt(var + LN_EPS) * lnw_ref[...] + lnb_ref[...]
    hs_b = hs.astype(bf16)

    # ---- fused [q | rot(q) | k | rot(k) | v] GEMM, head segments 128-lane aligned ----
    qkv = jnp.dot(hs_b, wqkv_ref[...], preferred_element_type=f32) + bqkv_ref[...]
    q = qkv[:, 0 * HW:1 * HW]          # (S, NH*128), all slices are full lane tiles
    q_rot = qkv[:, 1 * HW:2 * HW]
    k = qkv[:, 2 * HW:3 * HW]
    k_rot = qkv[:, 3 * HW:4 * HW]
    v = qkv[:, 4 * HW:5 * HW]

    # ---- RoPE: rotate_half already emitted by the GEMM; broadcast cos/sin across heads ----
    cos1 = cos_ref[0]                                            # (S, 128)
    sin1 = sin_ref[0]
    cos_t = jnp.concatenate([cos1] * NUM_HEADS, axis=-1)        # (S, NH*128), tile-aligned
    sin_t = jnp.concatenate([sin1] * NUM_HEADS, axis=-1)
    q = q * cos_t + q_rot * sin_t
    k = k * cos_t + k_rot * sin_t
    q = q * (HEAD_DIM ** -0.5)          # attention scaling applied to fp32 q

    q_b = q.astype(bf16)
    k_b = k.astype(bf16)
    v_b = v.astype(bf16)
    mask = mask_ref[0].astype(f32)                               # (S, S) additive mask

    # ---- per-head QK^T with tile-aligned slices; ONE softmax over all heads ----
    scores = []
    for h in range(NUM_HEADS):
        qh = q_b[:, h * HP:(h + 1) * HP]
        kh = k_b[:, h * HP:(h + 1) * HP]
        s_h = jax.lax.dot_general(qh, kh, (((1,), (1,)), ((), ())),
                                  preferred_element_type=f32) + mask
        scores.append(s_h)
    s_all = jnp.concatenate(scores, axis=0)                      # (NH*S, S)
    s_all = s_all - jnp.max(s_all, axis=-1, keepdims=True)
    p_all = jnp.exp(s_all)
    p_all = p_all * pl.reciprocal(jnp.sum(p_all, axis=-1, keepdims=True), approx=True)
    p_all = p_all.astype(bf16)

    # ---- PV per head (tile-aligned) -> padded context slab consumed directly by dense ----
    ctx = []
    for h in range(NUM_HEADS):
        p_h = p_all[h * S:(h + 1) * S, :]                        # sublane-aligned slice
        v_h = v_b[:, h * HP:(h + 1) * HP]
        ctx.append(jnp.dot(p_h, v_h, preferred_element_type=f32))
    ctx_pad = jnp.concatenate(ctx, axis=-1).astype(bf16)         # (S, NH*128)

    attn_out = jnp.dot(ctx_pad, wd_ref[...], preferred_element_type=f32) + bd_ref[...]

    # ---- MLP: fc2(gelu_new(fc1(hs))) ----
    f = jnp.dot(hs_b, w1_ref[...], preferred_element_type=f32) + b1_ref[...]
    c = math.sqrt(2.0 / math.pi)
    f = 0.5 * f * (1.0 + jnp.tanh(c * (f + 0.044715 * f * f * f)))
    mlp = jnp.dot(f.astype(bf16), w2_ref[...], preferred_element_type=f32) + b2_ref[...]

    # resid_dropout is identity in eval mode
    o_ref[0] = (attn_out + mlp + x).astype(o_ref.dtype)


# ---------------- wrapper-side weight / table prep ----------------
def _pad_head_cols(w):
    """(in, NH*HD) -> (in, NH*128): each head's columns start at a 128-lane boundary."""
    r = w.reshape(w.shape[0], NUM_HEADS, HEAD_DIM)
    r = jnp.pad(r, ((0, 0), (0, 0), (0, HP - HEAD_DIM)))
    return r.reshape(w.shape[0], NUM_HEADS * HP)


def _rot_head_cols(w):
    """Columns that emit rotate_half(rotary part) directly from the GEMM (zero elsewhere)."""
    r = w.reshape(w.shape[0], NUM_HEADS, HEAD_DIM)[..., :ROT_DIM]
    half = ROT_DIM // 2
    rh = jnp.concatenate([-r[..., half:], r[..., :half]], axis=-1)
    rh = jnp.pad(rh, ((0, 0), (0, 0), (0, HP - ROT_DIM)))
    return rh.reshape(w.shape[0], NUM_HEADS * HP)


def _pad_head_rows(w):
    """(NH*HD, out) -> (NH*128, out): dense projection consumes the padded ctx slab directly."""
    r = w.reshape(NUM_HEADS, HEAD_DIM, w.shape[1])
    r = jnp.pad(r, ((0, 0), (0, HP - HEAD_DIM), (0, 0)))
    return r.reshape(NUM_HEADS * HP, w.shape[1])


def rotary_cos_sin(seq_len):
    inv_freq = 1.0 / (ROPE_THETA ** (jnp.arange(0, ROT_DIM, 2, dtype=jnp.float32) / ROT_DIM))
    t = jnp.arange(seq_len, dtype=jnp.float32)
    freqs = jnp.outer(t, inv_freq)                  # (S, ROT_DIM/2)
    emb = jnp.concatenate([freqs, freqs], axis=-1)  # (S, ROT_DIM)
    return jnp.cos(emb), jnp.sin(emb)


def rope_tables(position_ids, seq_len):
    """(B, S, 128) cos / sin tables: rotary values on lanes [0, ROT_DIM), cos=1 / sin=0 beyond."""
    cos, sin = rotary_cos_sin(seq_len)
    cos_p = cos[position_ids]                       # (B, S, ROT_DIM)
    sin_p = sin[position_ids]
    B, S, _ = cos_p.shape
    pad1 = jnp.ones((B, S, HP - ROT_DIM), jnp.float32)
    pad0 = jnp.zeros((B, S, HP - ROT_DIM), jnp.float32)
    return (jnp.concatenate([cos_p, pad1], axis=-1),
            jnp.concatenate([sin_p, pad0], axis=-1))


def rotate_half(x):
    d = x.shape[-1] // 2
    return jnp.concatenate([-x[..., d:], x[..., :d]], axis=-1)


# ---------------- decoder layer forward (single fused pallas_call, grid over batch) ----------------
def gaudi_phi_decoder_layer(hidden_states, params, attention_mask, position_ids):
    B, S, H = hidden_states.shape
    bf16 = jnp.bfloat16

    qb = params["q_b"].reshape(1, -1)
    kb = params["k_b"].reshape(1, -1)
    vb = params["v_b"].reshape(1, -1)
    wqkvr = jnp.concatenate(
        [_pad_head_cols(params["q_w"]), _rot_head_cols(params["q_w"]),
         _pad_head_cols(params["k_w"]), _rot_head_cols(params["k_w"]),
         _pad_head_cols(params["v_w"])], axis=1).astype(bf16)           # (H, 5*NH*128)
    bqkvr = jnp.concatenate(
        [_pad_head_cols(qb), _rot_head_cols(qb),
         _pad_head_cols(kb), _rot_head_cols(kb),
         _pad_head_cols(vb)], axis=1)                                   # (1, 5*NH*128) fp32

    wd = _pad_head_rows(params["dense_w"]).astype(bf16)                 # (NH*128, H)
    w1 = params["fc1_w"].astype(bf16)
    w2 = params["fc2_w"].astype(bf16)

    cos_t, sin_t = rope_tables(position_ids, S)                         # (B, S, 128)
    mask3 = attention_mask[:, 0]                                        # (B, S, Skv)

    full2d = lambda a: pl.BlockSpec(a.shape, lambda b: (0, 0))
    per_batch = lambda a: pl.BlockSpec((1,) + a.shape[1:], lambda b: (b, 0, 0))

    args = (hidden_states,
            params["ln_w"].reshape(1, H), params["ln_b"].reshape(1, H),
            wqkvr, bqkvr,
            cos_t, sin_t, mask3,
            wd, params["dense_b"].reshape(1, H),
            w1, params["fc1_b"].reshape(1, INTERMEDIATE),
            w2, params["fc2_b"].reshape(1, H))

    in_specs = [per_batch(hidden_states),
                full2d(args[1]), full2d(args[2]),
                full2d(wqkvr), full2d(bqkvr),
                per_batch(cos_t), per_batch(sin_t), per_batch(mask3),
                full2d(wd), full2d(args[9]),
                full2d(w1), full2d(args[11]),
                full2d(w2), full2d(args[13])]

    out = pl.pallas_call(
        decoder_layer_kernel,
        out_shape=jax.ShapeDtypeStruct((B, S, H), hidden_states.dtype),
        grid=(B,),
        in_specs=in_specs,
        out_specs=pl.BlockSpec((1, S, H), lambda b: (b, 0, 0)),
        compiler_params=pltpu.CompilerParams(dimension_semantics=("parallel",)),
    )(*args)
    return out


# ---------------- deterministic parameter init ----------------
def init_params(key):
    def lin(key, fan_in, fan_out):
        kw, kb = jax.random.split(key)
        w = 0.02 * jax.random.normal(kw, (fan_in, fan_out), dtype=DTYPE)
        b = 0.02 * jax.random.normal(kb, (fan_out,), dtype=DTYPE)
        return w, b

    keys = jax.random.split(key, 8)
    params = {}
    params["ln_w"] = jnp.ones((HIDDEN,), DTYPE)
    params["ln_b"] = jnp.zeros((HIDDEN,), DTYPE)
    params["q_w"], params["q_b"] = lin(keys[0], HIDDEN, NUM_HEADS * HEAD_DIM)
    params["k_w"], params["k_b"] = lin(keys[1], HIDDEN, NUM_KV_HEADS * HEAD_DIM)
    params["v_w"], params["v_b"] = lin(keys[2], HIDDEN, NUM_KV_HEADS * HEAD_DIM)
    params["dense_w"], params["dense_b"] = lin(keys[3], NUM_HEADS * HEAD_DIM, HIDDEN)
    params["fc1_w"], params["fc1_b"] = lin(keys[4], HIDDEN, INTERMEDIATE)
    params["fc2_w"], params["fc2_b"] = lin(keys[5], INTERMEDIATE, HIDDEN)
    return params


# ---------------- pure-JAX fp32 reference ----------------
def reference(hidden_states, params, attention_mask, position_ids):
    B, S, H = hidden_states.shape
    x = hidden_states.astype(jnp.float32)
    mean = jnp.mean(x, -1, keepdims=True)
    var = jnp.mean((x - mean) ** 2, -1, keepdims=True)
    hs = (x - mean) / jnp.sqrt(var + LN_EPS) * params["ln_w"] + params["ln_b"]

    q = hs @ params["q_w"] + params["q_b"]
    k = hs @ params["k_w"] + params["k_b"]
    v = hs @ params["v_w"] + params["v_b"]
    q = q.reshape(B, S, NUM_HEADS, HEAD_DIM).transpose(0, 2, 1, 3)
    k = k.reshape(B, S, NUM_KV_HEADS, HEAD_DIM).transpose(0, 2, 1, 3)
    v = v.reshape(B, S, NUM_KV_HEADS, HEAD_DIM).transpose(0, 2, 1, 3)
    cos, sin = rotary_cos_sin(S)
    cos = cos[position_ids][:, None]
    sin = sin[position_ids][:, None]
    qr, qp = q[..., :ROT_DIM], q[..., ROT_DIM:]
    kr, kp = k[..., :ROT_DIM], k[..., ROT_DIM:]
    q = jnp.concatenate([qr * cos + rotate_half(qr) * sin, qp], -1)
    k = jnp.concatenate([kr * cos + rotate_half(kr) * sin, kp], -1)
    s = jnp.einsum("bhqd,bhkd->bhqk", q, k) * (HEAD_DIM ** -0.5) + attention_mask
    p = jax.nn.softmax(s, axis=-1)
    a = jnp.einsum("bhqk,bhkd->bhqd", p, v)
    a = a.transpose(0, 2, 1, 3).reshape(B, S, NUM_HEADS * HEAD_DIM)
    attn_out = a @ params["dense_w"] + params["dense_b"]
    f = hs @ params["fc1_w"] + params["fc1_b"]
    c = math.sqrt(2.0 / math.pi)
    f = 0.5 * f * (1.0 + jnp.tanh(c * (f + 0.044715 * f ** 3)))
    mlp = f @ params["fc2_w"] + params["fc2_b"]
    return attn_out + mlp + hidden_states


if __name__ == "__main__":
    key = jax.random.PRNGKey(0)
    k_x, k_p = jax.random.split(key)
    hidden_states = jax.random.normal(k_x, (BATCH, SEQ, HIDDEN), dtype=DTYPE)
    params = init_params(k_p)
    position_ids = jnp.broadcast_to(jnp.arange(SEQ), (BATCH, SEQ))

    # additive causal mask, shape (B, 1, S, S): 0 where visible, min_float where masked
    neg = jnp.finfo(DTYPE).min
    causal = jnp.where(jnp.tril(jnp.ones((SEQ, SEQ), dtype=bool)), 0.0, neg).astype(DTYPE)
    attention_mask = jnp.broadcast_to(causal[None, None], (BATCH, 1, SEQ, SEQ))

    out = gaudi_phi_decoder_layer(hidden_states, params, attention_mask, position_ids)
    out = jax.block_until_ready(out)

    ref = reference(hidden_states, params, attention_mask, position_ids)
    # tolerance accommodates bf16 MXU operands + approx-reciprocal softmax denominator
    assert jnp.allclose(out, ref, atol=2e-2, rtol=2e-2), "mismatch vs reference"
    print("KERNEL_OK")
</pallas_src>

<mosaic_0001>
module attributes {stable_mosaic.version = 11 : i64} {
  func.func @decoder_layer_kernel(%arg0: i32, %arg1: memref<1x8x64xf32, #tpu.memory_space<vmem>>, %arg2: memref<1x64xf32, #tpu.memory_space<vmem>>, %arg3: memref<1x64xf32, #tpu.memory_space<vmem>>, %arg4: memref<64x2560xbf16, #tpu.memory_space<vmem>>, %arg5: memref<1x2560xf32, #tpu.memory_space<vmem>>, %arg6: memref<1x8x128xf32, #tpu.memory_space<vmem>>, %arg7: memref<1x8x128xf32, #tpu.memory_space<vmem>>, %arg8: memref<1x8x8xf32, #tpu.memory_space<vmem>>, %arg9: memref<512x64xbf16, #tpu.memory_space<vmem>>, %arg10: memref<1x64xf32, #tpu.memory_space<vmem>>, %arg11: memref<64x128xbf16, #tpu.memory_space<vmem>>, %arg12: memref<1x128xf32, #tpu.memory_space<vmem>>, %arg13: memref<128x64xbf16, #tpu.memory_space<vmem>>, %arg14: memref<1x64xf32, #tpu.memory_space<vmem>>, %arg15: memref<1x8x64xf32, #tpu.memory_space<vmem>>) attributes {dimension_semantics = [#tpu.dimension_semantics<parallel>], iteration_bounds = array<i64: 2>, scalar_prefetch = 0 : i64, scratch_operands = 0 : i64, tpu.core_type = #tpu.core_type<tc>, window_params = [{transform_indices = @transform_0, window_bounds = array<i64: 1, 8, 64>}, {pipeline_mode = #tpu.pipeline_mode<synchronous>, transform_indices = @transform_1, window_bounds = array<i64: 1, 64>}, {pipeline_mode = #tpu.pipeline_mode<synchronous>, transform_indices = @transform_2, window_bounds = array<i64: 1, 64>}, {pipeline_mode = #tpu.pipeline_mode<synchronous>, transform_indices = @transform_3, window_bounds = array<i64: 64, 2560>}, {pipeline_mode = #tpu.pipeline_mode<synchronous>, transform_indices = @transform_4, window_bounds = array<i64: 1, 2560>}, {transform_indices = @transform_5, window_bounds = array<i64: 1, 8, 128>}, {transform_indices = @transform_6, window_bounds = array<i64: 1, 8, 128>}, {transform_indices = @transform_7, window_bounds = array<i64: 1, 8, 8>}, {pipeline_mode = #tpu.pipeline_mode<synchronous>, transform_indices = @transform_8, window_bounds = array<i64: 512, 64>}, {pipeline_mode = #tpu.pipeline_mode<synchronous>, transform_indices = @transform_9, window_bounds = array<i64: 1, 64>}, {pipeline_mode = #tpu.pipeline_mode<synchronous>, transform_indices = @transform_10, window_bounds = array<i64: 64, 128>}, {pipeline_mode = #tpu.pipeline_mode<synchronous>, transform_indices = @transform_11, window_bounds = array<i64: 1, 128>}, {pipeline_mode = #tpu.pipeline_mode<synchronous>, transform_indices = @transform_12, window_bounds = array<i64: 128, 64>}, {pipeline_mode = #tpu.pipeline_mode<synchronous>, transform_indices = @transform_13, window_bounds = array<i64: 1, 64>}, {transform_indices = @transform_14, window_bounds = array<i64: 1, 8, 64>}]} {
    %c0 = arith.constant 0 : index
    %c0_0 = arith.constant 0 : index
    %c0_1 = arith.constant 0 : index
    %0 = vector.load %arg1[%c0, %c0_0, %c0_1] : memref<1x8x64xf32, #tpu.memory_space<vmem>>, vector<1x8x64xf32>
    %1 = vector.shape_cast %0 : vector<1x8x64xf32> to vector<8x64xf32>
    %cst = arith.constant dense<0.000000e+00> : vector<8xf32>
    %2 = vector.multi_reduction <add>, %1, %cst [1] : vector<8x64xf32> to vector<8xf32>
    %3 = vector.shape_cast %2 : vector<8xf32> to vector<8x1xf32>
    %cst_2 = arith.constant 6.400000e+01 : f32
    %4 = vector.broadcast %cst_2 : f32 to vector<8x1xf32>
    %5 = arith.divf %3, %4 : vector<8x1xf32>
    %6 = vector.broadcast %5 : vector<8x1xf32> to vector<8x64xf32>
    %7 = arith.subf %1, %6 : vector<8x64xf32>
    %8 = arith.mulf %7, %7 : vector<8x64xf32>
    %cst_3 = arith.constant dense<0.000000e+00> : vector<8xf32>
    %9 = vector.multi_reduction <add>, %8, %cst_3 [1] : vector<8x64xf32> to vector<8xf32>
    %10 = vector.shape_cast %9 : vector<8xf32> to vector<8x1xf32>
    %cst_4 = arith.constant 6.400000e+01 : f32
    %11 = vector.broadcast %cst_4 : f32 to vector<8x1xf32>
    %12 = arith.divf %10, %11 : vector<8x1xf32>
    %13 = vector.broadcast %5 : vector<8x1xf32> to vector<8x64xf32>
    %14 = arith.subf %1, %13 : vector<8x64xf32>
    %cst_5 = arith.constant 9.99999974E-6 : f32
    %15 = vector.broadcast %cst_5 : f32 to vector<8x1xf32>
    %16 = arith.addf %12, %15 : vector<8x1xf32>
    %17 = math.rsqrt %16 : vector<8x1xf32>
    %18 = vector.broadcast %17 : vector<8x1xf32> to vector<8x64xf32>
    %19 = arith.mulf %14, %18 : vector<8x64xf32>
    %c0_6 = arith.constant 0 : index
    %c0_7 = arith.constant 0 : index
    %20 = vector.load %arg2[%c0_6, %c0_7] : memref<1x64xf32, #tpu.memory_space<vmem>>, vector<1x64xf32>
    %21 = vector.broadcast %20 : vector<1x64xf32> to vector<8x64xf32>
    %22 = arith.mulf %19, %21 : vector<8x64xf32>
    %c0_8 = arith.constant 0 : index
    %c0_9 = arith.constant 0 : index
    %23 = vector.load %arg3[%c0_8, %c0_9] : memref<1x64xf32, #tpu.memory_space<vmem>>, vector<1x64xf32>
    %24 = vector.broadcast %23 : vector<1x64xf32> to vector<8x64xf32>
    %25 = arith.addf %22, %24 : vector<8x64xf32>
    %26 = arith.truncf %25 : vector<8x64xf32> to vector<8x64xbf16>
    %c0_10 = arith.constant 0 : index
    %c0_11 = arith.constant 0 : index
    %27 = vector.load %arg4[%c0_10, %c0_11] : memref<64x2560xbf16, #tpu.memory_space<vmem>>, vector<64x2560xbf16>
    %cst_12 = arith.constant dense<0.000000e+00> : vector<8x2560xf32>
    %28 = tpu.matmul %26, %27, %cst_12 {dimension_numbers = #tpu.dot_dimension_numbers<[1], [0], [0], [1], [0, 0, 1, 1], [], []>} : vector<8x64xbf16>, vector<64x2560xbf16>, vector<8x2560xf32> -> vector<8x2560xf32>
    %c0_13 = arith.constant 0 : index
    %c0_14 = arith.constant 0 : index
    %29 = vector.load %arg5[%c0_13, %c0_14] : memref<1x2560xf32, #tpu.memory_space<vmem>>, vector<1x2560xf32>
    %30 = vector.broadcast %29 : vector<1x2560xf32> to vector<8x2560xf32>
    %31 = arith.addf %28, %30 : vector<8x2560xf32>
    %32 = vector.extract_strided_slice %31 {offsets = [0, 0], sizes = [8, 512], strides = [1, 1]} : vector<8x2560xf32> to vector<8x512xf32>
    %33 = vector.extract_strided_slice %31 {offsets = [0, 512], sizes = [8, 512], strides = [1, 1]} : vector<8x2560xf32> to vector<8x512xf32>
    %34 = vector.extract_strided_slice %31 {offsets = [0, 1024], sizes = [8, 512], strides = [1, 1]} : vector<8x2560xf32> to vector<8x512xf32>
    %35 = vector.extract_strided_slice %31 {offsets = [0, 1536], sizes = [8, 512], strides = [1, 1]} : vector<8x2560xf32> to vector<8x512xf32>
    %36 = vector.extract_strided_slice %31 {offsets = [0, 2048], sizes = [8, 512], strides = [1, 1]} : vector<8x2560xf32> to vector<8x512xf32>
    %c0_15 = arith.constant 0 : index
    %c0_16 = arith.constant 0 : index
    %c0_17 = arith.constant 0 : index
    %37 = vector.load %arg6[%c0_15, %c0_16, %c0_17] : memref<1x8x128xf32, #tpu.memory_space<vmem>>, vector<1x8x128xf32>
    %38 = vector.shape_cast %37 : vector<1x8x128xf32> to vector<8x128xf32>
    %c0_18 = arith.constant 0 : index
    %c0_19 = arith.constant 0 : index
    %c0_20 = arith.constant 0 : index
    %39 = vector.load %arg7[%c0_18, %c0_19, %c0_20] : memref<1x8x128xf32, #tpu.memory_space<vmem>>, vector<1x8x128xf32>
    %40 = vector.shape_cast %39 : vector<1x8x128xf32> to vector<8x128xf32>
    %41 = tpu.concatenate %38, %38, %38, %38 in 1 : vector<8x128xf32>, vector<8x128xf32>, vector<8x128xf32>, vector<8x128xf32> -> vector<8x512xf32>
    %42 = tpu.concatenate %40, %40, %40, %40 in 1 : vector<8x128xf32>, vector<8x128xf32>, vector<8x128xf32>, vector<8x128xf32> -> vector<8x512xf32>
    %43 = arith.mulf %32, %41 : vector<8x512xf32>
    %44 = arith.mulf %33, %42 : vector<8x512xf32>
    %45 = arith.addf %43, %44 : vector<8x512xf32>
    %46 = arith.mulf %34, %41 : vector<8x512xf32>
    %47 = arith.mulf %35, %42 : vector<8x512xf32>
    %48 = arith.addf %46, %47 : vector<8x512xf32>
    %cst_21 = arith.constant 2.500000e-01 : f32
    %49 = vector.broadcast %cst_21 : f32 to vector<8x512xf32>
    %50 = arith.mulf %45, %49 : vector<8x512xf32>
    %51 = arith.truncf %50 : vector<8x512xf32> to vector<8x512xbf16>
    %52 = arith.truncf %48 : vector<8x512xf32> to vector<8x512xbf16>
    %53 = arith.truncf %36 : vector<8x512xf32> to vector<8x512xbf16>
    %c0_22 = arith.constant 0 : index
    %c0_23 = arith.constant 0 : index
    %c0_24 = arith.constant 0 : index
    %54 = vector.load %arg8[%c0_22, %c0_23, %c0_24] : memref<1x8x8xf32, #tpu.memory_space<vmem>>, vector<1x8x8xf32>
    %55 = vector.shape_cast %54 : vector<1x8x8xf32> to vector<8x8xf32>
    %56 = vector.extract_strided_slice %51 {offsets = [0, 0], sizes = [8, 128], strides = [1, 1]} : vector<8x512xbf16> to vector<8x128xbf16>
    %57 = vector.extract_strided_slice %52 {offsets = [0, 0], sizes = [8, 128], strides = [1, 1]} : vector<8x512xbf16> to vector<8x128xbf16>
    %cst_25 = arith.constant dense<0.000000e+00> : vector<8x8xf32>
    %58 = tpu.matmul %56, %57, %cst_25 {dimension_numbers = #tpu.dot_dimension_numbers<[1], [1], [0], [0], [0, 0, 1, 0], [], []>} : vector<8x128xbf16>, vector<8x128xbf16>, vector<8x8xf32> -> vector<8x8xf32>
    %59 = arith.addf %58, %55 : vector<8x8xf32>
    %60 = vector.extract_strided_slice %51 {offsets = [0, 128], sizes = [8, 128], strides = [1, 1]} : vector<8x512xbf16> to vector<8x128xbf16>
    %61 = vector.extract_strided_slice %52 {offsets = [0, 128], sizes = [8, 128], strides = [1, 1]} : vector<8x512xbf16> to vector<8x128xbf16>
    %cst_26 = arith.constant dense<0.000000e+00> : vector<8x8xf32>
    %62 = tpu.matmul %60, %61, %cst_26 {dimension_numbers = #tpu.dot_dimension_numbers<[1], [1], [0], [0], [0, 0, 1, 0], [], []>} : vector<8x128xbf16>, vector<8x128xbf16>, vector<8x8xf32> -> vector<8x8xf32>
    %63 = arith.addf %62, %55 : vector<8x8xf32>
    %64 = vector.extract_strided_slice %51 {offsets = [0, 256], sizes = [8, 128], strides = [1, 1]} : vector<8x512xbf16> to vector<8x128xbf16>
    %65 = vector.extract_strided_slice %52 {offsets = [0, 256], sizes = [8, 128], strides = [1, 1]} : vector<8x512xbf16> to vector<8x128xbf16>
    %cst_27 = arith.constant dense<0.000000e+00> : vector<8x8xf32>
    %66 = tpu.matmul %64, %65, %cst_27 {dimension_numbers = #tpu.dot_dimension_numbers<[1], [1], [0], [0], [0, 0, 1, 0], [], []>} : vector<8x128xbf16>, vector<8x128xbf16>, vector<8x8xf32> -> vector<8x8xf32>
    %67 = arith.addf %66, %55 : vector<8x8xf32>
    %68 = vector.extract_strided_slice %51 {offsets = [0, 384], sizes = [8, 128], strides = [1, 1]} : vector<8x512xbf16> to vector<8x128xbf16>
    %69 = vector.extract_strided_slice %52 {offsets = [0, 384], sizes = [8, 128], strides = [1, 1]} : vector<8x512xbf16> to vector<8x128xbf16>
    %cst_28 = arith.constant dense<0.000000e+00> : vector<8x8xf32>
    %70 = tpu.matmul %68, %69, %cst_28 {dimension_numbers = #tpu.dot_dimension_numbers<[1], [1], [0], [0], [0, 0, 1, 0], [], []>} : vector<8x128xbf16>, vector<8x128xbf16>, vector<8x8xf32> -> vector<8x8xf32>
    %71 = arith.addf %70, %55 : vector<8x8xf32>
    %72 = tpu.concatenate %59, %63, %67, %71 in 0 : vector<8x8xf32>, vector<8x8xf32>, vector<8x8xf32>, vector<8x8xf32> -> vector<32x8xf32>
    %cst_29 = arith.constant dense<0xFF800000> : vector<32xf32>
    %73 = vector.multi_reduction <maximumf>, %72, %cst_29 [1] : vector<32x8xf32> to vector<32xf32>
    %74 = vector.shape_cast %73 : vector<32xf32> to vector<32x1xf32>
    %75 = vector.broadcast %74 : vector<32x1xf32> to vector<32x8xf32>
    %76 = arith.subf %72, %75 : vector<32x8xf32>
    %77 = math.exp %76 : vector<32x8xf32>
    %cst_30 = arith.constant dense<0.000000e+00> : vector<32xf32>
    %78 = vector.multi_reduction <add>, %77, %cst_30 [1] : vector<32x8xf32> to vector<32xf32>
    %79 = vector.shape_cast %78 : vector<32xf32> to vector<32x1xf32>
    %80 = tpu.reciprocal %79 {approx = true} : vector<32x1xf32> -> vector<32x1xf32>
    %81 = vector.broadcast %80 : vector<32x1xf32> to vector<32x8xf32>
    %82 = arith.mulf %77, %81 : vector<32x8xf32>
    %83 = arith.truncf %82 : vector<32x8xf32> to vector<32x8xbf16>
    %84 = vector.extract_strided_slice %83 {offsets = [0, 0], sizes = [8, 8], strides = [1, 1]} : vector<32x8xbf16> to vector<8x8xbf16>
    %85 = vector.extract_strided_slice %53 {offsets = [0, 0], sizes = [8, 128], strides = [1, 1]} : vector<8x512xbf16> to vector<8x128xbf16>
    %cst_31 = arith.constant dense<0.000000e+00> : vector<8x128xf32>
    %86 = tpu.matmul %84, %85, %cst_31 {dimension_numbers = #tpu.dot_dimension_numbers<[1], [0], [0], [1], [0, 0, 1, 1], [], []>} : vector<8x8xbf16>, vector<8x128xbf16>, vector<8x128xf32> -> vector<8x128xf32>
    %87 = vector.extract_strided_slice %83 {offsets = [8, 0], sizes = [8, 8], strides = [1, 1]} : vector<32x8xbf16> to vector<8x8xbf16>
    %88 = vector.extract_strided_slice %53 {offsets = [0, 128], sizes = [8, 128], strides = [1, 1]} : vector<8x512xbf16> to vector<8x128xbf16>
    %cst_32 = arith.constant dense<0.000000e+00> : vector<8x128xf32>
    %89 = tpu.matmul %87, %88, %cst_32 {dimension_numbers = #tpu.dot_dimension_numbers<[1], [0], [0], [1], [0, 0, 1, 1], [], []>} : vector<8x8xbf16>, vector<8x128xbf16>, vector<8x128xf32> -> vector<8x128xf32>
    %90 = vector.extract_strided_slice %83 {offsets = [16, 0], sizes = [8, 8], strides = [1, 1]} : vector<32x8xbf16> to vector<8x8xbf16>
    %91 = vector.extract_strided_slice %53 {offsets = [0, 256], sizes = [8, 128], strides = [1, 1]} : vector<8x512xbf16> to vector<8x128xbf16>
    %cst_33 = arith.constant dense<0.000000e+00> : vector<8x128xf32>
    %92 = tpu.matmul %90, %91, %cst_33 {dimension_numbers = #tpu.dot_dimension_numbers<[1], [0], [0], [1], [0, 0, 1, 1], [], []>} : vector<8x8xbf16>, vector<8x128xbf16>, vector<8x128xf32> -> vector<8x128xf32>
    %93 = vector.extract_strided_slice %83 {offsets = [24, 0], sizes = [8, 8], strides = [1, 1]} : vector<32x8xbf16> to vector<8x8xbf16>
    %94 = vector.extract_strided_slice %53 {offsets = [0, 384], sizes = [8, 128], strides = [1, 1]} : vector<8x512xbf16> to vector<8x128xbf16>
    %cst_34 = arith.constant dense<0.000000e+00> : vector<8x128xf32>
    %95 = tpu.matmul %93, %94, %cst_34 {dimension_numbers = #tpu.dot_dimension_numbers<[1], [0], [0], [1], [0, 0, 1, 1], [], []>} : vector<8x8xbf16>, vector<8x128xbf16>, vector<8x128xf32> -> vector<8x128xf32>
    %96 = tpu.concatenate %86, %89, %92, %95 in 1 : vector<8x128xf32>, vector<8x128xf32>, vector<8x128xf32>, vector<8x128xf32> -> vector<8x512xf32>
    %97 = arith.truncf %96 : vector<8x512xf32> to vector<8x512xbf16>
    %c0_35 = arith.constant 0 : index
    %c0_36 = arith.constant 0 : index
    %98 = vector.load %arg9[%c0_35, %c0_36] : memref<512x64xbf16, #tpu.memory_space<vmem>>, vector<512x64xbf16>
    %cst_37 = arith.constant dense<0.000000e+00> : vector<8x64xf32>
    %99 = tpu.matmul %97, %98, %cst_37 {dimension_numbers = #tpu.dot_dimension_numbers<[1], [0], [0], [1], [0, 0, 1, 1], [], []>} : vector<8x512xbf16>, vector<512x64xbf16>, vector<8x64xf32> -> vector<8x64xf32>
    %c0_38 = arith.constant 0 : index
    %c0_39 = arith.constant 0 : index
    %100 = vector.load %arg10[%c0_38, %c0_39] : memref<1x64xf32, #tpu.memory_space<vmem>>, vector<1x64xf32>
    %101 = vector.broadcast %100 : vector<1x64xf32> to vector<8x64xf32>
    %102 = arith.addf %99, %101 : vector<8x64xf32>
    %c0_40 = arith.constant 0 : index
    %c0_41 = arith.constant 0 : index
    %103 = vector.load %arg11[%c0_40, %c0_41] : memref<64x128xbf16, #tpu.memory_space<vmem>>, vector<64x128xbf16>
    %cst_42 = arith.constant dense<0.000000e+00> : vector<8x128xf32>
    %104 = tpu.matmul %26, %103, %cst_42 {dimension_numbers = #tpu.dot_dimension_numbers<[1], [0], [0], [1], [0, 0, 1, 1], [], []>} : vector<8x64xbf16>, vector<64x128xbf16>, vector<8x128xf32> -> vector<8x128xf32>
    %c0_43 = arith.constant 0 : index
    %c0_44 = arith.constant 0 : index
    %105 = vector.load %arg12[%c0_43, %c0_44] : memref<1x128xf32, #tpu.memory_space<vmem>>, vector<1x128xf32>
    %106 = vector.broadcast %105 : vector<1x128xf32> to vector<8x128xf32>
    %107 = arith.addf %104, %106 : vector<8x128xf32>
    %cst_45 = arith.constant 5.000000e-01 : f32
    %108 = vector.broadcast %cst_45 : f32 to vector<8x128xf32>
    %109 = arith.mulf %108, %107 : vector<8x128xf32>
    %cst_46 = arith.constant 4.471500e-02 : f32
    %110 = vector.broadcast %cst_46 : f32 to vector<8x128xf32>
    %111 = arith.mulf %110, %107 : vector<8x128xf32>
    %112 = arith.mulf %111, %107 : vector<8x128xf32>
    %113 = arith.mulf %112, %107 : vector<8x128xf32>
    %114 = arith.addf %107, %113 : vector<8x128xf32>
    %cst_47 = arith.constant 0.797884583 : f32
    %115 = vector.broadcast %cst_47 : f32 to vector<8x128xf32>
    %116 = arith.mulf %115, %114 : vector<8x128xf32>
    %117 = math.tanh %116 : vector<8x128xf32>
    %cst_48 = arith.constant 1.000000e+00 : f32
    %118 = vector.broadcast %cst_48 : f32 to vector<8x128xf32>
    %119 = arith.addf %118, %117 : vector<8x128xf32>
    %120 = arith.mulf %109, %119 : vector<8x128xf32>
    %121 = arith.truncf %120 : vector<8x128xf32> to vector<8x128xbf16>
    %c0_49 = arith.constant 0 : index
    %c0_50 = arith.constant 0 : index
    %122 = vector.load %arg13[%c0_49, %c0_50] : memref<128x64xbf16, #tpu.memory_space<vmem>>, vector<128x64xbf16>
    %cst_51 = arith.constant dense<0.000000e+00> : vector<8x64xf32>
    %123 = tpu.matmul %121, %122, %cst_51 {dimension_numbers = #tpu.dot_dimension_numbers<[1], [0], [0], [1], [0, 0, 1, 1], [], []>} : vector<8x128xbf16>, vector<128x64xbf16>, vector<8x64xf32> -> vector<8x64xf32>
    %c0_52 = arith.constant 0 : index
    %c0_53 = arith.constant 0 : index
    %124 = vector.load %arg14[%c0_52, %c0_53] : memref<1x64xf32, #tpu.memory_space<vmem>>, vector<1x64xf32>
    %125 = vector.broadcast %124 : vector<1x64xf32> to vector<8x64xf32>
    %126 = arith.addf %123, %125 : vector<8x64xf32>
    %127 = arith.addf %102, %126 : vector<8x64xf32>
    %128 = arith.addf %127, %1 : vector<8x64xf32>
    %c0_54 = arith.constant 0 : index
    %c0_55 = arith.constant 0 : index
    %c0_56 = arith.constant 0 : index
    %129 = vector.load %arg15[%c0_54, %c0_55, %c0_56] : memref<1x8x64xf32, #tpu.memory_space<vmem>>, vector<1x8x64xf32>
    %130 = vector.shape_cast %129 : vector<1x8x64xf32> to vector<8x64xf32>
    %131 = vector.shape_cast %128 : vector<8x64xf32> to vector<1x8x64xf32>
    tpu.vector_store %arg15[%c0_54, %c0_55, %c0_56], %131 {strides = array<i32>} : memref<1x8x64xf32, #tpu.memory_space<vmem>>, vector<1x8x64xf32>,
    return
  }
  func.func @transform_0(%arg0: i32) -> (i32, i32, i32) {
    %c0_i32 = arith.constant 0 : i32
    %c0_i32_0 = arith.constant 0 : i32
    %c0_i32_1 = arith.constant 0 : i32
    return %arg0, %c0_i32, %c0_i32_0 : i32, i32, i32
  }
  func.func @transform_1(%arg0: i32) -> (i32, i32) {
    %c0_i32 = arith.constant 0 : i32
    %c0_i32_0 = arith.constant 0 : i32
    %c0_i32_1 = arith.constant 0 : i32
    return %c0_i32, %c0_i32_0 : i32, i32
  }
  func.func @transform_2(%arg0: i32) -> (i32, i32) {
    %c0_i32 = arith.constant 0 : i32
    %c0_i32_0 = arith.constant 0 : i32
    %c0_i32_1 = arith.constant 0 : i32
    return %c0_i32, %c0_i32_0 : i32, i32
  }
  func.func @transform_3(%arg0: i32) -> (i32, i32) {
    %c0_i32 = arith.constant 0 : i32
    %c0_i32_0 = arith.constant 0 : i32
    %c0_i32_1 = arith.constant 0 : i32
    return %c0_i32, %c0_i32_0 : i32, i32
  }
  func.func @transform_4(%arg0: i32) -> (i32, i32) {
    %c0_i32 = arith.constant 0 : i32
    %c0_i32_0 = arith.constant 0 : i32
    %c0_i32_1 = arith.constant 0 : i32
    return %c0_i32, %c0_i32_0 : i32, i32
  }
  func.func @transform_5(%arg0: i32) -> (i32, i32, i32) {
    %c0_i32 = arith.constant 0 : i32
    %c0_i32_0 = arith.constant 0 : i32
    %c0_i32_1 = arith.constant 0 : i32
    return %arg0, %c0_i32, %c0_i32_0 : i32, i32, i32
  }
  func.func @transform_6(%arg0: i32) -> (i32, i32, i32) {
    %c0_i32 = arith.constant 0 : i32
    %c0_i32_0 = arith.constant 0 : i32
    %c0_i32_1 = arith.constant 0 : i32
    return %arg0, %c0_i32, %c0_i32_0 : i32, i32, i32
  }
  func.func @transform_7(%arg0: i32) -> (i32, i32, i32) {
    %c0_i32 = arith.constant 0 : i32
    %c0_i32_0 = arith.constant 0 : i32
    %c0_i32_1 = arith.constant 0 : i32
    return %arg0, %c0_i32, %c0_i32_0 : i32, i32, i32
  }
  func.func @transform_8(%arg0: i32) -> (i32, i32) {
    %c0_i32 = arith.constant 0 : i32
    %c0_i32_0 = arith.constant 0 : i32
    %c0_i32_1 = arith.constant 0 : i32
    return %c0_i32, %c0_i32_0 : i32, i32
  }
  func.func @transform_9(%arg0: i32) -> (i32, i32) {
    %c0_i32 = arith.constant 0 : i32
    %c0_i32_0 = arith.constant 0 : i32
    %c0_i32_1 = arith.constant 0 : i32
    return %c0_i32, %c0_i32_0 : i32, i32
  }
  func.func @transform_10(%arg0: i32) -> (i32, i32) {
    %c0_i32 = arith.constant 0 : i32
    %c0_i32_0 = arith.constant 0 : i32
    %c0_i32_1 = arith.constant 0 : i32
    return %c0_i32, %c0_i32_0 : i32, i32
  }
  func.func @transform_11(%arg0: i32) -> (i32, i32) {
    %c0_i32 = arith.constant 0 : i32
    %c0_i32_0 = arith.constant 0 : i32
    %c0_i32_1 = arith.constant 0 : i32
    return %c0_i32, %c0_i32_0 : i32, i32
  }
  func.func @transform_12(%arg0: i32) -> (i32, i32) {
    %c0_i32 = arith.constant 0 : i32
    %c0_i32_0 = arith.constant 0 : i32
    %c0_i32_1 = arith.constant 0 : i32
    return %c0_i32, %c0_i32_0 : i32, i32
  }
  func.func @transform_13(%arg0: i32) -> (i32, i32) {
    %c0_i32 = arith.constant 0 : i32
    %c0_i32_0 = arith.constant 0 : i32
    %c0_i32_1 = arith.constant 0 : i32
    return %c0_i32, %c0_i32_0 : i32, i32
  }
  func.func @transform_14(%arg0: i32) -> (i32, i32, i32) {
    %c0_i32 = arith.constant 0 : i32
    %c0_i32_0 = arith.constant 0 : i32
    %c0_i32_1 = arith.constant 0 : i32
    return %arg0, %c0_i32, %c0_i32_0 : i32, i32, i32
  }
}

</mosaic_0001>

<llo_original>
// kernel: tpu_custom_call.1
$region0: #{tpu_custom_call.1}
  #allocation0 [shape = 'u32[]', space=smem, size = 0x4, offset = 0x4, fixed_abs, tag = 'smem constant byte address 0x4 - core index']
  #allocation1 [shape = 'u32[72,128]{1,0:T(1,128)}', space=vmem, size = 0x9000, scoped, tag = 'internal scratch']
  %s0 = inlined_call_operand.vmem [shape: f32[2,8,64], index: 0, kind: input, shape index: {}]
  %s1 = inlined_call_operand.vmem [shape: f32[1,64], index: 1, kind: input, shape index: {}]
  %s2 = inlined_call_operand.vmem [shape: f32[1,64], index: 2, kind: input, shape index: {}]
  %s3 = inlined_call_operand.hbm [shape: bf16[64,2560], index: 3, kind: input, shape index: {}]
  %s4 = inlined_call_operand.vmem [shape: f32[1,2560], index: 4, kind: input, shape index: {}]
  %s5 = inlined_call_operand.vmem [shape: f32[2,8,128], index: 5, kind: input, shape index: {}]
  %s6 = inlined_call_operand.vmem [shape: f32[2,8,128], index: 6, kind: input, shape index: {}]
  %s7 = inlined_call_operand.vmem [shape: f32[2,8,8], index: 7, kind: input, shape index: {}]
  %s8 = inlined_call_operand.vmem [shape: bf16[512,64], index: 8, kind: input, shape index: {}]
  %s9 = inlined_call_operand.vmem [shape: f32[1,64], index: 9, kind: input, shape index: {}]
  %s10 = inlined_call_operand.vmem [shape: bf16[64,128], index: 10, kind: input, shape index: {}]
  %s11 = inlined_call_operand.vmem [shape: f32[1,128], index: 11, kind: input, shape index: {}]
  %s12 = inlined_call_operand.vmem [shape: bf16[128,64], index: 12, kind: input, shape index: {}]
  %s13 = inlined_call_operand.vmem [shape: f32[1,64], index: 13, kind: input, shape index: {}]
  %s14 = inlined_call_operand.hbm [shape: f32[2,8,64], index: 14, kind: output, shape index: {}]
  %s15 = sld [smem:[#allocation0]]
  $region93: #{tpu_custom_call.1} parent=0
    _
  %s17 = ssub.s32 1, %s15
  %s18 = scalar_select 0, %s17, %s15
  $region1: #{tpu_custom_call.1} parent=0
    #allocation2 [shape = 'u8[327680]{0}', space=vmem, size = 0x50000, scoped, tag = 'input window, operand 3, single buffered']
    #allocation3 [shape = 's32[2]{0}', space=sflag, size = 0x8, scoped, tag = 'scoped memory for tpu_custom_call.1']
    #allocation4 [shape = 's32[2]{0}', space=sflag, size = 0x8, scoped, tag = 'scoped memory for tpu_custom_call.1']
    #allocation5 [shape = 'u8[8192]{0}', space=vmem, size = 0x2000, scoped, tag = 'output window, operand 0']
    %19 = vsyncpa [#allocation3], 0
    %20 = vsyncpa [#allocation4], 0
    %s21 = scalar_lea.sflag [#allocation4], 1
    %22 = vsyncpa %s21, 0
    loop: start=0, step=1, limit=4
    $region2: #{tpu_custom_call.1} parent=1 // loop_pre_header
      _
    $region3: #{tpu_custom_call.1} parent=1 // loop_header
      %s24 = sphi 0, %s28
      %p25 = scmp.ge.s32.totalorder %s24, 4
      %s34 = sphi 0, %s36
      %s37 = sphi 0, %s34
      %s38 = sphi 0, %s37
      %s54 = sphi 0, %s38
      %s58 = sphi 0, %s58
      %s60 = sphi 0, %s58
      %s61 = sphi 0, %s60
      %s75 = sphi 0, %s61
      %s79 = sphi 0, %s79
      %s81 = sphi 0, %s79
      %s82 = sphi 0, %s81
      %s96 = sphi 0, %s82
      %s100 = sphi 0, %s100
      %s102 = sphi 0, %s100
      %s103 = sphi 0, %s102
      %s117 = sphi 0, %s103
      %s121 = sphi 0, %s121
      %s123 = sphi 0, %s121
      %s124 = sphi 0, %s123
      %s138 = sphi 0, %s124
      %s144 = sphi 0, %s146
      %s147 = sphi 0, %s144
      %s148 = sphi 0, %s147
      %s164 = sphi 0, %s148
      %s170 = sphi 0, %s172
      %s173 = sphi 0, %s170
      %s174 = sphi 0, %s173
      %s190 = sphi 0, %s174
      %s196 = sphi 0, %s198
      %s199 = sphi 0, %s196
      %s200 = sphi 0, %s199
      %s216 = sphi 0, %s200
      %s220 = sphi 0, %s220
      %s222 = sphi 0, %s220
      %s223 = sphi 0, %s222
      %s237 = sphi 0, %s223
      %s241 = sphi 0, %s241
      %s243 = sphi 0, %s241
      %s244 = sphi 0, %s243
      %s258 = sphi 0, %s244
      %s262 = sphi 0, %s262
      %s264 = sphi 0, %s262
      %s265 = sphi 0, %s264
      %s279 = sphi 0, %s265
      %s283 = sphi 0, %s283
      %s285 = sphi 0, %s283
      %s286 = sphi 0, %s285
      %s300 = sphi 0, %s286
      %s304 = sphi 0, %s304
      %s306 = sphi 0, %s304
      %s307 = sphi 0, %s306
      %s321 = sphi 0, %s307
      %s325 = sphi 0, %s325
      %s327 = sphi 0, %s325
      %s328 = sphi 0, %s327
      %s342 = sphi 0, %s328
      %s348 = sphi 0, %s350
      %s351 = sphi 0, %s348
      %s352 = sphi 0, %s351
      %s368 = sphi 0, %s352
    $region4: #{tpu_custom_call.1} parent=1 // loop_header_branch
      %27 = sbr.rel (%p25) target = $region8
    $region5: #{tpu_custom_call.1} parent=1 // loop_body
      %s29 = ssub.s32 %s24, 1
      %s30 = ssub.s32 %s24, 2
      %s31 = sadd.s32 %s24, 1
      %s32 = ssub.s32 %s24, %s31
      %p33 = scmp.eq.s32.totalorder %s32, 0
      %s35 = sadd.s32 %s34, 1
      %s36 = scalar_select %p33, %s34, %s35
      %p39 = pneg %p33
      %p40 = scmp.eq.s32.totalorder %s24, 1
      %p41 = por %p39, %p40
      %p42 = scmp.ne.s32.totalorder %s34, %s37
      %p43 = scmp.eq.s32.totalorder %s24, 0
      %p44 = por %p42, %p43
      %p45 = scmp.ne.s32.totalorder %s34, %s37
      %p46 = scmp.eq.s32.totalorder %s29, 1
      %p47 = por %p45, %p46
      %p48 = scmp.ne.s32.totalorder %s37, %s38
      %p49 = scmp.eq.s32.totalorder %s29, 0
      %p50 = por %p48, %p49
      %p51 = scmp.ne.s32.totalorder %s37, %s38
      %p52 = scmp.eq.s32.totalorder %s30, 1
      %p53 = por %p51, %p52
      %p55 = scmp.ne.s32.totalorder %s38, %s54
      %p56 = scmp.eq.s32.totalorder %s30, 0
      %p57 = por %p55, %p56
      %s59 = sadd.s32 %s58, 1
      %p62 = scmp.eq.s32.totalorder %s24, 1
      %p63 = scmp.ne.s32.totalorder %s58, %s60
      %p64 = scmp.eq.s32.totalorder %s24, 0
      %p65 = por %p63, %p64
      %p66 = scmp.ne.s32.totalorder %s58, %s60
      %p67 = scmp.eq.s32.totalorder %s29, 1
      %p68 = por %p66, %p67
      %p69 = scmp.ne.s32.totalorder %s60, %s61
      %p70 = scmp.eq.s32.totalorder %s29, 0
      %p71 = por %p69, %p70
      %p72 = scmp.ne.s32.totalorder %s60, %s61
      %p73 = scmp.eq.s32.totalorder %s30, 1
      %p74 = por %p72, %p73
      %p76 = scmp.ne.s32.totalorder %s61, %s75
      %p77 = scmp.eq.s32.totalorder %s30, 0
      %p78 = por %p76, %p77
      %s80 = sadd.s32 %s79, 1
      %p83 = scmp.eq.s32.totalorder %s24, 1
      %p84 = scmp.ne.s32.totalorder %s79, %s81
      %p85 = scmp.eq.s32.totalorder %s24, 0
      %p86 = por %p84, %p85
      %p87 = scmp.ne.s32.totalorder %s79, %s81
      %p88 = scmp.eq.s32.totalorder %s29, 1
      %p89 = por %p87, %p88
      %p90 = scmp.ne.s32.totalorder %s81, %s82
      %p91 = scmp.eq.s32.totalorder %s29, 0
      %p92 = por %p90, %p91
      %p93 = scmp.ne.s32.totalorder %s81, %s82
      %p94 = scmp.eq.s32.totalorder %s30, 1
      %p95 = por %p93, %p94
      %p97 = scmp.ne.s32.totalorder %s82, %s96
      %p98 = scmp.eq.s32.totalorder %s30, 0
      %p99 = por %p97, %p98
      %s101 = sadd.s32 %s100, 1
      %p104 = scmp.eq.s32.totalorder %s24, 1
      %p105 = scmp.ne.s32.totalorder %s100, %s102
      %p106 = scmp.eq.s32.totalorder %s24, 0
      %p107 = por %p105, %p106
      %p108 = scmp.ne.s32.totalorder %s100, %s102
      %p109 = scmp.eq.s32.totalorder %s29, 1
      %p110 = por %p108, %p109
      %p111 = scmp.ne.s32.totalorder %s102, %s103
      %p112 = scmp.eq.s32.totalorder %s29, 0
      %p113 = por %p111, %p112
      %p114 = scmp.ne.s32.totalorder %s102, %s103
      %p115 = scmp.eq.s32.totalorder %s30, 1
      %p116 = por %p114, %p115
      %p118 = scmp.ne.s32.totalorder %s103, %s117
      %p119 = scmp.eq.s32.totalorder %s30, 0
      %p120 = por %p118, %p119
      %s122 = sadd.s32 %s121, 1
      %p125 = scmp.eq.s32.totalorder %s24, 1
      %p126 = scmp.ne.s32.totalorder %s121, %s123
      %p127 = scmp.eq.s32.totalorder %s24, 0
      %p128 = por %p126, %p127
      %p129 = scmp.ne.s32.totalorder %s121, %s123
      %p130 = scmp.eq.s32.totalorder %s29, 1
      %p131 = por %p129, %p130
      %p132 = scmp.ne.s32.totalorder %s123, %s124
      %p133 = scmp.eq.s32.totalorder %s29, 0
      %p134 = por %p132, %p133
      %p135 = scmp.ne.s32.totalorder %s123, %s124
      %p136 = scmp.eq.s32.totalorder %s30, 1
      %p137 = por %p135, %p136
      %p139 = scmp.ne.s32.totalorder %s124, %s138
      %p140 = scmp.eq.s32.totalorder %s30, 0
      %p141 = por %p139, %p140
      %s142 = ssub.s32 %s24, %s31
      %p143 = scmp.eq.s32.totalorder %s142, 0
      %s145 = sadd.s32 %s144, 1
      %s146 = scalar_select %p143, %s144, %s145
      %p149 = pneg %p143
      %p150 = scmp.eq.s32.totalorder %s24, 1
      %p151 = por %p149, %p150
      %p152 = scmp.ne.s32.totalorder %s144, %s147
      %p153 = scmp.eq.s32.totalorder %s24, 0
      %p154 = por %p152, %p153
      %p155 = scmp.ne.s32.totalorder %s144, %s147
      %p156 = scmp.eq.s32.totalorder %s29, 1
      %p157 = por %p155, %p156
      %p158 = scmp.ne.s32.totalorder %s147, %s148
      %p159 = scmp.eq.s32.totalorder %s29, 0
      %p160 = por %p158, %p159
      %p161 = scmp.ne.s32.totalorder %s147, %s148
      %p162 = scmp.eq.s32.totalorder %s30, 1
      %p163 = por %p161, %p162
      %p165 = scmp.ne.s32.totalorder %s148, %s164
      %p166 = scmp.eq.s32.totalorder %s30, 0
      %p167 = por %p165, %p166
      %s168 = ssub.s32 %s24, %s31
      %p169 = scmp.eq.s32.totalorder %s168, 0
      %s171 = sadd.s32 %s170, 1
      %s172 = scalar_select %p169, %s170, %s171
      %p175 = pneg %p169
      %p176 = scmp.eq.s32.totalorder %s24, 1
      %p177 = por %p175, %p176
      %p178 = scmp.ne.s32.totalorder %s170, %s173
      %p179 = scmp.eq.s32.totalorder %s24, 0
      %p180 = por %p178, %p179
      %p181 = scmp.ne.s32.totalorder %s170, %s173
      %p182 = scmp.eq.s32.totalorder %s29, 1
      %p183 = por %p181, %p182
      %p184 = scmp.ne.s32.totalorder %s173, %s174
      %p185 = scmp.eq.s32.totalorder %s29, 0
      %p186 = por %p184, %p185
      %p187 = scmp.ne.s32.totalorder %s173, %s174
      %p188 = scmp.eq.s32.totalorder %s30, 1
      %p189 = por %p187, %p188
      %p191 = scmp.ne.s32.totalorder %s174, %s190
      %p192 = scmp.eq.s32.totalorder %s30, 0
      %p193 = por %p191, %p192
      %s194 = ssub.s32 %s24, %s31
      %p195 = scmp.eq.s32.totalorder %s194, 0
      %s197 = sadd.s32 %s196, 1
      %s198 = scalar_select %p195, %s196, %s197
      %p201 = pneg %p195
      %p202 = scmp.eq.s32.totalorder %s24, 1
      %p203 = por %p201, %p202
      %p204 = scmp.ne.s32.totalorder %s196, %s199
      %p205 = scmp.eq.s32.totalorder %s24, 0
      %p206 = por %p204, %p205
      %p207 = scmp.ne.s32.totalorder %s196, %s199
      %p208 = scmp.eq.s32.totalorder %s29, 1
      %p209 = por %p207, %p208
      %p210 = scmp.ne.s32.totalorder %s199, %s200
      %p211 = scmp.eq.s32.totalorder %s29, 0
      %p212 = por %p210, %p211
      %p213 = scmp.ne.s32.totalorder %s199, %s200
      %p214 = scmp.eq.s32.totalorder %s30, 1
      %p215 = por %p213, %p214
      %p217 = scmp.ne.s32.totalorder %s200, %s216
      %p218 = scmp.eq.s32.totalorder %s30, 0
      %p219 = por %p217, %p218
      %s221 = sadd.s32 %s220, 1
      %p224 = scmp.eq.s32.totalorder %s24, 1
      %p225 = scmp.ne.s32.totalorder %s220, %s222
      %p226 = scmp.eq.s32.totalorder %s24, 0
      %p227 = por %p225, %p226
      %p228 = scmp.ne.s32.totalorder %s220, %s222
      %p229 = scmp.eq.s32.totalorder %s29, 1
      %p230 = por %p228, %p229
      %p231 = scmp.ne.s32.totalorder %s222, %s223
      %p232 = scmp.eq.s32.totalorder %s29, 0
      %p233 = por %p231, %p232
      %p234 = scmp.ne.s32.totalorder %s222, %s223
      %p235 = scmp.eq.s32.totalorder %s30, 1
      %p236 = por %p234, %p235
      %p238 = scmp.ne.s32.totalorder %s223, %s237
      %p239 = scmp.eq.s32.totalorder %s30, 0
      %p240 = por %p238, %p239
      %s242 = sadd.s32 %s241, 1
      %p245 = scmp.eq.s32.totalorder %s24, 1
      %p246 = scmp.ne.s32.totalorder %s241, %s243
      %p247 = scmp.eq.s32.totalorder %s24, 0
      %p248 = por %p246, %p247
      %p249 = scmp.ne.s32.totalorder %s241, %s243
      %p250 = scmp.eq.s32.totalorder %s29, 1
      %p251 = por %p249, %p250
      %p252 = scmp.ne.s32.totalorder %s243, %s244
      %p253 = scmp.eq.s32.totalorder %s29, 0
      %p254 = por %p252, %p253
      %p255 = scmp.ne.s32.totalorder %s243, %s244
      %p256 = scmp.eq.s32.totalorder %s30, 1
      %p257 = por %p255, %p256
      %p259 = scmp.ne.s32.totalorder %s244, %s258
      %p260 = scmp.eq.s32.totalorder %s30, 0
      %p261 = por %p259, %p260
      %s263 = sadd.s32 %s262, 1
      %p266 = scmp.eq.s32.totalorder %s24, 1
      %p267 = scmp.ne.s32.totalorder %s262, %s264
      %p268 = scmp.eq.s32.totalorder %s24, 0
      %p269 = por %p267, %p268
      %p270 = scmp.ne.s32.totalorder %s262, %s264
      %p271 = scmp.eq.s32.totalorder %s29, 1
      %p272 = por %p270, %p271
      %p273 = scmp.ne.s32.totalorder %s264, %s265
      %p274 = scmp.eq.s32.totalorder %s29, 0
      %p275 = por %p273, %p274
      %p276 = scmp.ne.s32.totalorder %s264, %s265
      %p277 = scmp.eq.s32.totalorder %s30, 1
      %p278 = por %p276, %p277
      %p280 = scmp.ne.s32.totalorder %s265, %s279
      %p281 = scmp.eq.s32.totalorder %s30, 0
      %p282 = por %p280, %p281
      %s284 = sadd.s32 %s283, 1
      %p287 = scmp.eq.s32.totalorder %s24, 1
      %p288 = scmp.ne.s32.totalorder %s283, %s285
      %p289 = scmp.eq.s32.totalorder %s24, 0
      %p290 = por %p288, %p289
      %p291 = scmp.ne.s32.totalorder %s283, %s285
      %p292 = scmp.eq.s32.totalorder %s29, 1
      %p293 = por %p291, %p292
      %p294 = scmp.ne.s32.totalorder %s285, %s286
      %p295 = scmp.eq.s32.totalorder %s29, 0
      %p296 = por %p294, %p295
      %p297 = scmp.ne.s32.totalorder %s285, %s286
      %p298 = scmp.eq.s32.totalorder %s30, 1
      %p299 = por %p297, %p298
      %p301 = scmp.ne.s32.totalorder %s286, %s300
      %p302 = scmp.eq.s32.totalorder %s30, 0
      %p303 = por %p301, %p302
      %s305 = sadd.s32 %s304, 1
      %p308 = scmp.eq.s32.totalorder %s24, 1
      %p309 = scmp.ne.s32.totalorder %s304, %s306
      %p310 = scmp.eq.s32.totalorder %s24, 0
      %p311 = por %p309, %p310
      %p312 = scmp.ne.s32.totalorder %s304, %s306
      %p313 = scmp.eq.s32.totalorder %s29, 1
      %p314 = por %p312, %p313
      %p315 = scmp.ne.s32.totalorder %s306, %s307
      %p316 = scmp.eq.s32.totalorder %s29, 0
      %p317 = por %p315, %p316
      %p318 = scmp.ne.s32.totalorder %s306, %s307
      %p319 = scmp.eq.s32.totalorder %s30, 1
      %p320 = por %p318, %p319
      %p322 = scmp.ne.s32.totalorder %s307, %s321
      %p323 = scmp.eq.s32.totalorder %s30, 0
      %p324 = por %p322, %p323
      %s326 = sadd.s32 %s325, 1
      %p329 = scmp.eq.s32.totalorder %s24, 1
      %p330 = scmp.ne.s32.totalorder %s325, %s327
      %p331 = scmp.eq.s32.totalorder %s24, 0
      %p332 = por %p330, %p331
      %p333 = scmp.ne.s32.totalorder %s325, %s327
      %p334 = scmp.eq.s32.totalorder %s29, 1
      %p335 = por %p333, %p334
      %p336 = scmp.ne.s32.totalorder %s327, %s328
      %p337 = scmp.eq.s32.totalorder %s29, 0
      %p338 = por %p336, %p337
      %p339 = scmp.ne.s32.totalorder %s327, %s328
      %p340 = scmp.eq.s32.totalorder %s30, 1
      %p341 = por %p339, %p340
      %p343 = scmp.ne.s32.totalorder %s328, %s342
      %p344 = scmp.eq.s32.totalorder %s30, 0
      %p345 = por %p343, %p344
      %s346 = ssub.s32 %s24, %s31
      %p347 = scmp.eq.s32.totalorder %s346, 0
      %s349 = sadd.s32 %s348, 1
      %s350 = scalar_select %p347, %s348, %s349
      %p353 = pneg %p347
      %p354 = scmp.eq.s32.totalorder %s24, 1
      %p355 = por %p353, %p354
      %p356 = scmp.ne.s32.totalorder %s348, %s351
      %p357 = scmp.eq.s32.totalorder %s24, 0
      %p358 = por %p356, %p357
      %p359 = scmp.ne.s32.totalorder %s348, %s351
      %p360 = scmp.eq.s32.totalorder %s29, 1
      %p361 = por %p359, %p360
      %p362 = scmp.ne.s32.totalorder %s351, %s352
      %p363 = scmp.eq.s32.totalorder %s29, 0
      %p364 = por %p362, %p363
      %p365 = scmp.ne.s32.totalorder %s351, %s352
      %p366 = scmp.eq.s32.totalorder %s30, 1
      %p367 = por %p365, %p366
      %p369 = scmp.ne.s32.totalorder %s352, %s368
      %p370 = scmp.eq.s32.totalorder %s30, 0
      %p371 = por %p369, %p370
      %p372 = scmp.le.s32.totalorder 1, %s24
      %p373 = scmp.lt.s32.totalorder %s24, 3
      %p374 = pnand %p372, %p373
      %p375 = pneg %p374
      // Predicated region
      $region9: #{tpu_custom_call.1} parent=5 // pred_check
        _
      $region10: #{tpu_custom_call.1} parent=5 // pred_check_branch
        %377 = sbr.rel (%p374) target = $region12
      $region11: #{tpu_custom_call.1} parent=5 // pred_region
        %s378 = ssub.s32 %s24, 1
        // Predicated region
        $region13: #{tpu_custom_call.1} parent=11 // pred_check
          %p379 = pneg %p71
        $region14: #{tpu_custom_call.1} parent=11 // pred_check_branch
          %381 = sbr.rel (%p379) target = $region16
        $region15: #{tpu_custom_call.1} parent=11 // pred_region
          _
        $region16: #{tpu_custom_call.1} parent=11 // pred_fallthru
          _
        // Predicated region
        $region17: #{tpu_custom_call.1} parent=11 // pred_check
          %p382 = pneg %p92
        $region18: #{tpu_custom_call.1} parent=11 // pred_check_branch
          %384 = sbr.rel (%p382) target = $region20
        $region19: #{tpu_custom_call.1} parent=11 // pred_region
          _
        $region20: #{tpu_custom_call.1} parent=11 // pred_fallthru
          _
        // Predicated region
        $region21: #{tpu_custom_call.1} parent=11 // pred_check
          %p385 = pneg %p113
        $region22: #{tpu_custom_call.1} parent=11 // pred_check_branch
          %387 = sbr.rel (%p385) target = $region24
        $region23: #{tpu_custom_call.1} parent=11 // pred_region
          %389 = vsyncadd [#allocation3], 0
          %s390 = sshll.u32 %s3, 4
          %s391 = int_to_ptr.hbm [resolvable:$true] %s390
          %s392 = sshll.u32 [#allocation2], 4
          %s393 = int_to_ptr.vmem [resolvable:$true] %s392
          %398 = dma.hbm_to_vmem [thread:$0]  %s391, 10240, %s393, [#allocation3], 1280, 1280, 80
        $region24: #{tpu_custom_call.1} parent=11 // pred_fallthru
          _
        // Predicated region
        $region25: #{tpu_custom_call.1} parent=11 // pred_check
          %p399 = pneg %p134
        $region26: #{tpu_custom_call.1} parent=11 // pred_check_branch
          %401 = sbr.rel (%p399) target = $region28
        $region27: #{tpu_custom_call.1} parent=11 // pred_region
          _
        $region28: #{tpu_custom_call.1} parent=11 // pred_fallthru
          _
        // Predicated region
        $region29: #{tpu_custom_call.1} parent=11 // pred_check
          %p402 = pneg %p233
        $region30: #{tpu_custom_call.1} parent=11 // pred_check_branch
          %404 = sbr.rel (%p402) target = $region32
        $region31: #{tpu_custom_call.1} parent=11 // pred_region
          _
        $region32: #{tpu_custom_call.1} parent=11 // pred_fallthru
          _
        // Predicated region
        $region33: #{tpu_custom_call.1} parent=11 // pred_check
          %p405 = pneg %p254
        $region34: #{tpu_custom_call.1} parent=11 // pred_check_branch
          %407 = sbr.rel (%p405) target = $region36
        $region35: #{tpu_custom_call.1} parent=11 // pred_region
          _
        $region36: #{tpu_custom_call.1} parent=11 // pred_fallthru
          _
        // Predicated region
        $region37: #{tpu_custom_call.1} parent=11 // pred_check
          %p408 = pneg %p275
        $region38: #{tpu_custom_call.1} parent=11 // pred_check_branch
          %410 = sbr.rel (%p408) target = $region40
        $region39: #{tpu_custom_call.1} parent=11 // pred_region
          _
        $region40: #{tpu_custom_call.1} parent=11 // pred_fallthru
          _
        // Predicated region
        $region41: #{tpu_custom_call.1} parent=11 // pred_check
          %p411 = pneg %p296
        $region42: #{tpu_custom_call.1} parent=11 // pred_check_branch
          %413 = sbr.rel (%p411) target = $region44
        $region43: #{tpu_custom_call.1} parent=11 // pred_region
          _
        $region44: #{tpu_custom_call.1} parent=11 // pred_fallthru
          _
        // Predicated region
        $region45: #{tpu_custom_call.1} parent=11 // pred_check
          %p414 = pneg %p317
        $region46: #{tpu_custom_call.1} parent=11 // pred_check_branch
          %416 = sbr.rel (%p414) target = $region48
        $region47: #{tpu_custom_call.1} parent=11 // pred_region
          _
        $region48: #{tpu_custom_call.1} parent=11 // pred_fallthru
          _
        // Predicated region
        $region49: #{tpu_custom_call.1} parent=11 // pred_check
          %p417 = pneg %p338
        $region50: #{tpu_custom_call.1} parent=11 // pred_check_branch
          %419 = sbr.rel (%p417) target = $region52
        $region51: #{tpu_custom_call.1} parent=11 // pred_region
          _
        $region52: #{tpu_custom_call.1} parent=11 // pred_fallthru
          _
      $region12: #{tpu_custom_call.1} parent=5 // pred_fallthru
        _
      %p420 = scmp.lt.s32.totalorder %s24, 2
      // Predicated region
      $region53: #{tpu_custom_call.1} parent=5 // pred_check
        %p421 = pneg %p420
      $region54: #{tpu_custom_call.1} parent=5 // pred_check_branch
        %423 = sbr.rel (%p421) target = $region56
      $region55: #{tpu_custom_call.1} parent=5 // pred_region
        // Predicated region
        $region57: #{tpu_custom_call.1} parent=55 // pred_check
          %p424 = pneg %p44
        $region58: #{tpu_custom_call.1} parent=55 // pred_check_branch
          %426 = sbr.rel (%p424) target = $region60
        $region59: #{tpu_custom_call.1} parent=55 // pred_region
          %p427 = scmp.lt.s32.totalorder %s24, 1
          %s428 = scalar_select %p427, %s24, 1
          %s429 = smul.addr %s428, 8
          %s430 = scalar_lea.vmem %s0, %s429
        $region60: #{tpu_custom_call.1} parent=55 // pred_fallthru
          _
        // Predicated region
        $region61: #{tpu_custom_call.1} parent=55 // pred_check
          %p431 = pneg %p154
        $region62: #{tpu_custom_call.1} parent=55 // pred_check_branch
          %433 = sbr.rel (%p431) target = $region64
        $region63: #{tpu_custom_call.1} parent=55 // pred_region
          %p434 = scmp.lt.s32.totalorder %s24, 1
          %s435 = scalar_select %p434, %s24, 1
          %s436 = smul.addr %s435, 8
          %s437 = scalar_lea.vmem %s5, %s436
        $region64: #{tpu_custom_call.1} parent=55 // pred_fallthru
          _
        // Predicated region
        $region65: #{tpu_custom_call.1} parent=55 // pred_check
          %p438 = pneg %p180
        $region66: #{tpu_custom_call.1} parent=55 // pred_check_branch
          %440 = sbr.rel (%p438) target = $region68
        $region67: #{tpu_custom_call.1} parent=55 // pred_region
          %p441 = scmp.lt.s32.totalorder %s24, 1
          %s442 = scalar_select %p441, %s24, 1
          %s443 = smul.addr %s442, 8
          %s444 = scalar_lea.vmem %s6, %s443
        $region68: #{tpu_custom_call.1} parent=55 // pred_fallthru
          _
        // Predicated region
        $region69: #{tpu_custom_call.1} parent=55 // pred_check
          %p445 = pneg %p206
        $region70: #{tpu_custom_call.1} parent=55 // pred_check_branch
          %447 = sbr.rel (%p445) target = $region72
        $region71: #{tpu_custom_call.1} parent=55 // pred_region
          %p448 = scmp.lt.s32.totalorder %s24, 1
          %s449 = scalar_select %p448, %s24, 1
          %s450 = smul.addr %s449, 8
          %s451 = scalar_lea.vmem %s7, %s450
        $region72: #{tpu_custom_call.1} parent=55 // pred_fallthru
          _
      $region56: #{tpu_custom_call.1} parent=5 // pred_fallthru
        _
      %p452 = scmp.le.s32.totalorder 1, %s24
      %p453 = scmp.lt.s32.totalorder %s24, 3
      %p454 = pnand %p452, %p453
      %p455 = pneg %p454
      // Predicated region
      $region73: #{tpu_custom_call.1} parent=5 // pred_check
        _
      $region74: #{tpu_custom_call.1} parent=5 // pred_check_branch
        %457 = sbr.rel (%p454) target = $region76
      $region75: #{tpu_custom_call.1} parent=5 // pred_region
        %s458 = ssub.s32 %s24, 1
        // Predicated region
        $region77: #{tpu_custom_call.1} parent=75 // pred_check
          %p459 = pneg %p113
        $region78: #{tpu_custom_call.1} parent=75 // pred_check_branch
          %461 = sbr.rel (%p459) target = $region80
        $region79: #{tpu_custom_call.1} parent=75 // pred_region
          %463 = dma.done [#allocation3], 10240
        $region80: #{tpu_custom_call.1} parent=75 // pred_fallthru
          _
        %p464 = scmp.lt.s32.totalorder %s29, 1
        %s465 = scalar_select %p464, %s29, 1
        %s466 = smul.addr %s465, 8
        %s467 = scalar_lea.vmem %s0, %s466
        %p468 = pneg %p50
        %p469 = pneg %p47
        %p470 = pneg %p71
        %p471 = pneg %p68
        %p472 = pneg %p92
        %p473 = pneg %p89
        %p474 = pneg %p113
        %p475 = pneg %p110
        %p476 = pneg %p134
        %p477 = pneg %p131
        %p478 = scmp.lt.s32.totalorder %s29, 1
        %s479 = scalar_select %p478, %s29, 1
        %s480 = smul.addr %s479, 8
        %s481 = scalar_lea.vmem %s5, %s480
        %p482 = pneg %p160
        %p483 = pneg %p157
        %p484 = scmp.lt.s32.totalorder %s29, 1
        %s485 = scalar_select %p484, %s29, 1
        %s486 = smul.addr %s485, 8
        %s487 = scalar_lea.vmem %s6, %s486
        %p488 = pneg %p186
        %p489 = pneg %p183
        %p490 = scmp.lt.s32.totalorder %s29, 1
        %s491 = scalar_select %p490, %s29, 1
        %s492 = smul.addr %s491, 8
        %s493 = scalar_lea.vmem %s7, %s492
        %p494 = pneg %p212
        %p495 = pneg %p209
        %p496 = pneg %p233
        %p497 = pneg %p230
        %p498 = pneg %p254
        %p499 = pneg %p251
        %p500 = pneg %p275
        %p501 = pneg %p272
        %p502 = pneg %p296
        %p503 = pneg %p293
        %p504 = pneg %p317
        %p505 = pneg %p314
        %p506 = pneg %p338
        %p507 = pneg %p335
        %p508 = pneg %p364
        %p509 = pneg %p361
        %s510 = sand.u32 %s351, 1
        %s511 = scalar_lea.sflag [#allocation4], %s510
        %s512 = sand.u32 %s351, 1
        %s513 = smul.addr %s512, 8
        %s514 = scalar_lea.vmem [#allocation5], %s513
        %p515 = scmp.lt.s32.totalorder %s29, 1
        %s516 = scalar_select %p515, %s29, 1
        %s517 = smul.addr %s516, 8
        %s518 = scalar_lea.vmem %s0, %s517
        %p519 = scmp.lt.s32.totalorder %s29, 1
        %s520 = scalar_select %p519, %s29, 1
        %s521 = smul.addr %s520, 8
        %s522 = scalar_lea.vmem %s5, %s521
        %p523 = scmp.lt.s32.totalorder %s29, 1
        %s524 = scalar_select %p523, %s29, 1
        %s525 = smul.addr %s524, 8
        %s526 = scalar_lea.vmem %s6, %s525
        %p527 = scmp.lt.s32.totalorder %s29, 1
        %s528 = scalar_select %p527, %s29, 1
        %s529 = smul.addr %s528, 8
        %s530 = scalar_lea.vmem %s7, %s529
        %v532 = vld [vmem:[%s518] sm:$0xff]
        %vm533 = vcmask 523264
        %v534 = vsel %vm533, %v532, 0.0
        %535 = vadd.xlane.f32.xlu0 %v534
        %v536 = vpop.xlane.xlu0 %535
        %v537 = vrcp.pop 64.0
        %v538 = vmul.f32 64.0, %v537
        %v539 = vsub.f32 1.0, %v538
        %v540 = vmul.f32 %v537, %v539
        %v541 = vadd.f32 %v537, %v540
        %vm542 = vweird.f32 %v537
        %v543 = vsel %vm542, %v537, %v541
        %v544 = vmul.f32 %v536, %v543
        %v545 = vsub.f32 %v532, %v544
        %v546 = vmul.f32 %v545, %v545
        %v547 = vsel %vm533, %v546, 0.0
        %548 = vadd.xlane.f32.xlu0 %v547
        %v549 = vpop.xlane.xlu0 %548
        %v550 = vmul.f32 %v549, %v543
        %v551 = vadd.f32 %v550, 1e-05
        %v552 = vrsqrt.pop %v551
        %v553 = vmul.f32 %v552, %v551
        %v554 = vmul.f32 %v553, %v552
        %v555 = vmul.f32 0.5, %v554
        %v556 = vsub.f32 1.5, %v555
        %v557 = vmul.f32 %v552, %v556
        %vm558 = vweird.f32 %v551
        %vm559 = vweird.f32 %v552
        %vm560 = vmor %vm558, %vm559
        %v561 = vsel %vm560, %v552, %v557
        %v562 = vmul.f32 %v545, %v561
        %v563 = vld [vmem:[%s1] sm:$0x1]
        %v565 = vperm.slane %v563, 0
        %v567 = vmul.f32 %v562, %v565
        %v568 = vld [vmem:[%s2] sm:$0x1]
        %v570 = vperm.slane %v568, 0
        %v572 = vadd.f32 %v567, %v570
        %v573 = vpack.c.bf16 %v572, %v572
        %v574 = vld [vmem:[#allocation2] sm:$0xff]
        %v575 = vld [vmem:[#allocation2 + $0x8] sm:$0xff]
        %v576 = vld [vmem:[#allocation2 + $0x10] sm:$0xff]
        %v577 = vld [vmem:[#allocation2 + $0x18] sm:$0xff]
        %v578 = vld [vmem:[#allocation2 + $0x20] sm:$0xff]
        %v579 = vld [vmem:[#allocation2 + $0x28] sm:$0xff]
        %v580 = vld [vmem:[#allocation2 + $0x30] sm:$0xff]
        %v581 = vld [vmem:[#allocation2 + $0x38] sm:$0xff]
        %v582 = vld [vmem:[#allocation2 + $0x40] sm:$0xff]
        %v583 = vld [vmem:[#allocation2 + $0x48] sm:$0xff]
        %v584 = vld [vmem:[#allocation2 + $0x50] sm:$0xff]
        %v585 = vld [vmem:[#allocation2 + $0x58] sm:$0xff]
        %v586 = vld [vmem:[#allocation2 + $0x60] sm:$0xff]
        %v587 = vld [vmem:[#allocation2 + $0x68] sm:$0xff]
        %v588 = vld [vmem:[#allocation2 + $0x70] sm:$0xff]
        %v589 = vld [vmem:[#allocation2 + $0x78] sm:$0xff]
        %v590 = vld [vmem:[#allocation2 + $0x80] sm:$0xff]
        %v591 = vld [vmem:[#allocation2 + $0x88] sm:$0xff]
        %v592 = vld [vmem:[#allocation2 + $0x90] sm:$0xff]
        %v593 = vld [vmem:[#allocation2 + $0x98] sm:$0xff]
        %v594 = vld [vmem:[#allocation2 + $0xa0] sm:$0xff]
        %v595 = vld [vmem:[#allocation2 + $0xa8] sm:$0xff]
        %v596 = vld [vmem:[#allocation2 + $0xb0] sm:$0xff]
        %v597 = vld [vmem:[#allocation2 + $0xb8] sm:$0xff]
        %v598 = vld [vmem:[#allocation2 + $0xc0] sm:$0xff]
        %v599 = vld [vmem:[#allocation2 + $0xc8] sm:$0xff]
        %v600 = vld [vmem:[#allocation2 + $0xd0] sm:$0xff]
        %v601 = vld [vmem:[#allocation2 + $0xd8] sm:$0xff]
        %v602 = vld [vmem:[#allocation2 + $0xe0] sm:$0xff]
        %v603 = vld [vmem:[#allocation2 + $0xe8] sm:$0xff]
        %v604 = vld [vmem:[#allocation2 + $0xf0] sm:$0xff]
        %v605 = vld [vmem:[#allocation2 + $0xf8] sm:$0xff]
        %v606 = vld [vmem:[#allocation2 + $0x100] sm:$0xff]
        %v607 = vld [vmem:[#allocation2 + $0x108] sm:$0xff]
        %v608 = vld [vmem:[#allocation2 + $0x110] sm:$0xff]
        %v609 = vld [vmem:[#allocation2 + $0x118] sm:$0xff]
        %v610 = vld [vmem:[#allocation2 + $0x120] sm:$0xff]
        %v611 = vld [vmem:[#allocation2 + $0x128] sm:$0xff]
        %v612 = vld [vmem:[#allocation2 + $0x130] sm:$0xff]
        %v613 = vld [vmem:[#allocation2 + $0x138] sm:$0xff]
        %v614 = vld [vmem:[#allocation2 + $0x140] sm:$0xff]
        %v615 = vld [vmem:[#allocation2 + $0x148] sm:$0xff]
        %v616 = vld [vmem:[#allocation2 + $0x150] sm:$0xff]
        %v617 = vld [vmem:[#allocation2 + $0x158] sm:$0xff]
        %v618 = vld [vmem:[#allocation2 + $0x160] sm:$0xff]
        %v619 = vld [vmem:[#allocation2 + $0x168] sm:$0xff]
        %v620 = vld [vmem:[#allocation2 + $0x170] sm:$0xff]
        %v621 = vld [vmem:[#allocation2 + $0x178] sm:$0xff]
        %v622 = vld [vmem:[#allocation2 + $0x180] sm:$0xff]
        %v623 = vld [vmem:[#allocation2 + $0x188] sm:$0xff]
        %v624 = vld [vmem:[#allocation2 + $0x190] sm:$0xff]
        %v625 = vld [vmem:[#allocation2 + $0x198] sm:$0xff]
        %v626 = vld [vmem:[#allocation2 + $0x1a0] sm:$0xff]
        %v627 = vld [vmem:[#allocation2 + $0x1a8] sm:$0xff]
        %v628 = vld [vmem:[#allocation2 + $0x1b0] sm:$0xff]
        %v629 = vld [vmem:[#allocation2 + $0x1b8] sm:$0xff]
        %v630 = vld [vmem:[#allocation2 + $0x1c0] sm:$0xff]
        %v631 = vld [vmem:[#allocation2 + $0x1c8] sm:$0xff]
        %v632 = vld [vmem:[#allocation2 + $0x1d0] sm:$0xff]
        %v633 = vld [vmem:[#allocation2 + $0x1d8] sm:$0xff]
        %v634 = vld [vmem:[#allocation2 + $0x1e0] sm:$0xff]
        %v635 = vld [vmem:[#allocation2 + $0x1e8] sm:$0xff]
        %v636 = vld [vmem:[#allocation2 + $0x1f0] sm:$0xff]
        %v637 = vld [vmem:[#allocation2 + $0x1f8] sm:$0xff]
        %v638 = vld [vmem:[#allocation2 + $0x200] sm:$0xff]
        %v639 = vld [vmem:[#allocation2 + $0x208] sm:$0xff]
        %v640 = vld [vmem:[#allocation2 + $0x210] sm:$0xff]
        %v641 = vld [vmem:[#allocation2 + $0x218] sm:$0xff]
        %v642 = vld [vmem:[#allocation2 + $0x220] sm:$0xff]
        %v643 = vld [vmem:[#allocation2 + $0x228] sm:$0xff]
        %v644 = vld [vmem:[#allocation2 + $0x230] sm:$0xff]
        %v645 = vld [vmem:[#allocation2 + $0x238] sm:$0xff]
        %v646 = vld [vmem:[#allocation2 + $0x240] sm:$0xff]
        %v647 = vld [vmem:[#allocation2 + $0x248] sm:$0xff]
        %v648 = vld [vmem:[#allocation2 + $0x250] sm:$0xff]
        %v649 = vld [vmem:[#allocation2 + $0x258] sm:$0xff]
        %v650 = vld [vmem:[#allocation2 + $0x260] sm:$0xff]
        %v651 = vld [vmem:[#allocation2 + $0x268] sm:$0xff]
        %v652 = vld [vmem:[#allocation2 + $0x270] sm:$0xff]
        %v653 = vld [vmem:[#allocation2 + $0x278] sm:$0xff]
        %v654 = vld [vmem:[%s4] sm:$0xff]
        %v655 = vld [vmem:[%s4 + $0x8] sm:$0xff]
        %v656 = vld [vmem:[%s4 + $0x10] sm:$0xf]
        %v660 = vperm.slane %v654, 0
        %v661 = vperm.slane %v654, 1
        %v662 = vperm.slane %v654, 2
        %v663 = vperm.slane %v654, 3
        %v664 = vperm.slane %v654, 4
        %v665 = vperm.slane %v654, 5
        %v666 = vperm.slane %v654, 6
        %v667 = vperm.slane %v654, 7
        %v668 = vperm.slane %v655, 0
        %v669 = vperm.slane %v655, 1
        %v670 = vperm.slane %v655, 2
        %v671 = vperm.slane %v655, 3
        %v672 = vperm.slane %v655, 4
        %v673 = vperm.slane %v655, 5
        %v674 = vperm.slane %v655, 6
        %v675 = vperm.slane %v655, 7
        %v676 = vperm.slane %v656, 0
        %v677 = vperm.slane %v656, 1
        %v678 = vperm.slane %v656, 2
        %v679 = vperm.slane %v656, 3
        %v780 = vunpack.c.l.b16 %v574
        %v781 = vunpack.c.h.b16 %v574
        %v782 = vunpack.c.l.b16 %v575
        %v783 = vunpack.c.h.b16 %v575
        %v784 = vunpack.c.l.b16 %v576
        %v785 = vunpack.c.h.b16 %v576
        %v786 = vunpack.c.l.b16 %v577
        %v787 = vunpack.c.h.b16 %v577
        %v788 = vunpack.c.l.b16 %v578
        %v789 = vunpack.c.h.b16 %v578
        %v790 = vunpack.c.l.b16 %v579
        %v791 = vunpack.c.h.b16 %v579
        %v792 = vunpack.c.l.b16 %v580
        %v793 = vunpack.c.h.b16 %v580
        %v794 = vunpack.c.l.b16 %v581
        %v795 = vunpack.c.h.b16 %v581
        %v796 = vunpack.c.l.b16 %v582
        %v797 = vunpack.c.h.b16 %v582
        %v798 = vunpack.c.l.b16 %v583
        %v799 = vunpack.c.h.b16 %v583
        %v800 = vunpack.c.l.b16 %v584
        %v801 = vunpack.c.h.b16 %v584
        %v802 = vunpack.c.l.b16 %v585
        %v803 = vunpack.c.h.b16 %v585
        %v804 = vunpack.c.l.b16 %v586
        %v805 = vunpack.c.h.b16 %v586
        %v806 = vunpack.c.l.b16 %v587
        %v807 = vunpack.c.h.b16 %v587
        %v808 = vunpack.c.l.b16 %v588
        %v809 = vunpack.c.h.b16 %v588
        %v810 = vunpack.c.l.b16 %v589
        %v811 = vunpack.c.h.b16 %v589
        %v812 = vunpack.c.l.b16 %v590
        %v813 = vunpack.c.h.b16 %v590
        %v814 = vunpack.c.l.b16 %v591
        %v815 = vunpack.c.h.b16 %v591
        %v816 = vunpack.c.l.b16 %v592
        %v817 = vunpack.c.h.b16 %v592
        %v818 = vunpack.c.l.b16 %v593
        %v819 = vunpack.c.h.b16 %v593
        %v820 = vunpack.c.l.b16 %v594
        %v821 = vunpack.c.h.b16 %v594
        %v822 = vunpack.c.l.b16 %v595
        %v823 = vunpack.c.h.b16 %v595
        %v824 = vunpack.c.l.b16 %v596
        %v825 = vunpack.c.h.b16 %v596
        %v826 = vunpack.c.l.b16 %v597
        %v827 = vunpack.c.h.b16 %v597
        %v828 = vunpack.c.l.b16 %v598
        %v829 = vunpack.c.h.b16 %v598
        %v830 = vunpack.c.l.b16 %v599
        %v831 = vunpack.c.h.b16 %v599
        %v832 = vunpack.c.l.b16 %v600
        %v833 = vunpack.c.h.b16 %v600
        %v834 = vunpack.c.l.b16 %v601
        %v835 = vunpack.c.h.b16 %v601
        %v836 = vunpack.c.l.b16 %v602
        %v837 = vunpack.c.h.b16 %v602
        %v838 = vunpack.c.l.b16 %v603
        %v839 = vunpack.c.h.b16 %v603
        %v840 = vunpack.c.l.b16 %v604
        %v841 = vunpack.c.h.b16 %v604
        %v842 = vunpack.c.l.b16 %v605
        %v843 = vunpack.c.h.b16 %v605
        %v844 = vunpack.c.l.b16 %v606
        %v845 = vunpack.c.h.b16 %v606
        %v846 = vunpack.c.l.b16 %v607
        %v847 = vunpack.c.h.b16 %v607
        %v848 = vunpack.c.l.b16 %v608
        %v849 = vunpack.c.h.b16 %v608
        %v850 = vunpack.c.l.b16 %v609
        %v851 = vunpack.c.h.b16 %v609
        %v852 = vunpack.c.l.b16 %v610
        %v853 = vunpack.c.h.b16 %v610
        %v854 = vunpack.c.l.b16 %v611
        %v855 = vunpack.c.h.b16 %v611
        %v856 = vunpack.c.l.b16 %v612
        %v857 = vunpack.c.h.b16 %v612
        %v858 = vunpack.c.l.b16 %v613
        %v859 = vunpack.c.h.b16 %v613
        %v860 = vunpack.c.l.b16 %v614
        %v861 = vunpack.c.h.b16 %v614
        %v862 = vunpack.c.l.b16 %v615
        %v863 = vunpack.c.h.b16 %v615
        %v864 = vunpack.c.l.b16 %v616
        %v865 = vunpack.c.h.b16 %v616
        %v866 = vunpack.c.l.b16 %v617
        %v867 = vunpack.c.h.b16 %v617
        %v868 = vunpack.c.l.b16 %v618
        %v869 = vunpack.c.h.b16 %v618
        %v870 = vunpack.c.l.b16 %v619
        %v871 = vunpack.c.h.b16 %v619
        %v872 = vunpack.c.l.b16 %v620
        %v873 = vunpack.c.h.b16 %v620
        %v874 = vunpack.c.l.b16 %v621
        %v875 = vunpack.c.h.b16 %v621
        %v876 = vunpack.c.l.b16 %v622
        %v877 = vunpack.c.h.b16 %v622
        %v878 = vunpack.c.l.b16 %v623
        %v879 = vunpack.c.h.b16 %v623
        %v880 = vunpack.c.l.b16 %v624
        %v881 = vunpack.c.h.b16 %v624
        %v882 = vunpack.c.l.b16 %v625
        %v883 = vunpack.c.h.b16 %v625
        %v884 = vunpack.c.l.b16 %v626
        %v885 = vunpack.c.h.b16 %v626
        %v886 = vunpack.c.l.b16 %v627
        %v887 = vunpack.c.h.b16 %v627
        %v888 = vunpack.c.l.b16 %v628
        %v889 = vunpack.c.h.b16 %v628
        %v890 = vunpack.c.l.b16 %v629
        %v891 = vunpack.c.h.b16 %v629
        %v892 = vunpack.c.l.b16 %v630
        %v893 = vunpack.c.h.b16 %v630
        %v894 = vunpack.c.l.b16 %v631
        %v895 = vunpack.c.h.b16 %v631
        %v896 = vunpack.c.l.b16 %v632
        %v897 = vunpack.c.h.b16 %v632
        %v898 = vunpack.c.l.b16 %v633
        %v899 = vunpack.c.h.b16 %v633
        %v900 = vunpack.c.l.b16 %v634
        %v901 = vunpack.c.h.b16 %v634
        %v902 = vunpack.c.l.b16 %v635
        %v903 = vunpack.c.h.b16 %v635
        %v904 = vunpack.c.l.b16 %v636
        %v905 = vunpack.c.h.b16 %v636
        %v906 = vunpack.c.l.b16 %v637
        %v907 = vunpack.c.h.b16 %v637
        %v908 = vunpack.c.l.b16 %v638
        %v909 = vunpack.c.h.b16 %v638
        %v910 = vunpack.c.l.b16 %v639
        %v911 = vunpack.c.h.b16 %v639
        %v912 = vunpack.c.l.b16 %v640
        %v913 = vunpack.c.h.b16 %v640
        %v914 = vunpack.c.l.b16 %v641
        %v915 = vunpack.c.h.b16 %v641
        %v916 = vunpack.c.l.b16 %v642
        %v917 = vunpack.c.h.b16 %v642
        %v918 = vunpack.c.l.b16 %v643
        %v919 = vunpack.c.h.b16 %v643
        %v920 = vunpack.c.l.b16 %v644
        %v921 = vunpack.c.h.b16 %v644
        %v922 = vunpack.c.l.b16 %v645
        %v923 = vunpack.c.h.b16 %v645
        %v924 = vunpack.c.l.b16 %v646
        %v925 = vunpack.c.h.b16 %v646
        %v926 = vunpack.c.l.b16 %v647
        %v927 = vunpack.c.h.b16 %v647
        %v928 = vunpack.c.l.b16 %v648
        %v929 = vunpack.c.h.b16 %v648
        %v930 = vunpack.c.l.b16 %v649
        %v931 = vunpack.c.h.b16 %v649
        %v932 = vunpack.c.l.b16 %v650
        %v933 = vunpack.c.h.b16 %v650
        %v934 = vunpack.c.l.b16 %v651
        %v935 = vunpack.c.h.b16 %v651
        %v936 = vunpack.c.l.b16 %v652
        %v937 = vunpack.c.h.b16 %v652
        %v938 = vunpack.c.l.b16 %v653
        %v939 = vunpack.c.h.b16 %v653
        %v940 = vpack.c.b16 %v800, %v780
        %v941 = vpack.c.b16 %v801, %v781
        %v942 = vpack.c.b16 %v802, %v782
        %v943 = vpack.c.b16 %v803, %v783
        %v944 = vpack.c.b16 %v804, %v784
        %v945 = vpack.c.b16 %v805, %v785
        %v946 = vpack.c.b16 %v806, %v786
        %v947 = vpack.c.b16 %v807, %v787
        %v948 = vpack.c.b16 %v808, %v788
        %v949 = vpack.c.b16 %v809, %v789
        %v950 = vpack.c.b16 %v810, %v790
        %v951 = vpack.c.b16 %v811, %v791
        %v952 = vpack.c.b16 %v812, %v792
        %v953 = vpack.c.b16 %v813, %v793
        %v954 = vpack.c.b16 %v814, %v794
        %v955 = vpack.c.b16 %v815, %v795
        %v956 = vpack.c.b16 %v816, %v796
        %v957 = vpack.c.b16 %v817, %v797
        %v958 = vpack.c.b16 %v818, %v798
        %v959 = vpack.c.b16 %v819, %v799
        %v960 = vpack.c.b16 %v840, %v820
        %v961 = vpack.c.b16 %v841, %v821
        %v962 = vpack.c.b16 %v842, %v822
        %v963 = vpack.c.b16 %v843, %v823
        %v964 = vpack.c.b16 %v844, %v824
        %v965 = vpack.c.b16 %v845, %v825
        %v966 = vpack.c.b16 %v846, %v826
        %v967 = vpack.c.b16 %v847, %v827
        %v968 = vpack.c.b16 %v848, %v828
        %v969 = vpack.c.b16 %v849, %v829
        %v970 = vpack.c.b16 %v850, %v830
        %v971 = vpack.c.b16 %v851, %v831
        %v972 = vpack.c.b16 %v852, %v832
        %v973 = vpack.c.b16 %v853, %v833
        %v974 = vpack.c.b16 %v854, %v834
        %v975 = vpack.c.b16 %v855, %v835
        %v976 = vpack.c.b16 %v856, %v836
        %v977 = vpack.c.b16 %v857, %v837
        %v978 = vpack.c.b16 %v858, %v838
        %v979 = vpack.c.b16 %v859, %v839
        %v980 = vpack.c.b16 %v880, %v860
        %v981 = vpack.c.b16 %v881, %v861
        %v982 = vpack.c.b16 %v882, %v862
        %v983 = vpack.c.b16 %v883, %v863
        %v984 = vpack.c.b16 %v884, %v864
        %v985 = vpack.c.b16 %v885, %v865
        %v986 = vpack.c.b16 %v886, %v866
        %v987 = vpack.c.b16 %v887, %v867
        %v988 = vpack.c.b16 %v888, %v868
        %v989 = vpack.c.b16 %v889, %v869
        %v990 = vpack.c.b16 %v890, %v870
        %v991 = vpack.c.b16 %v891, %v871
        %v992 = vpack.c.b16 %v892, %v872
        %v993 = vpack.c.b16 %v893, %v873
        %v994 = vpack.c.b16 %v894, %v874
        %v995 = vpack.c.b16 %v895, %v875
        %v996 = vpack.c.b16 %v896, %v876
        %v997 = vpack.c.b16 %v897, %v877
        %v998 = vpack.c.b16 %v898, %v878
        %v999 = vpack.c.b16 %v899, %v879
        %v1000 = vpack.c.b16 %v920, %v900
        %v1001 = vpack.c.b16 %v921, %v901
        %v1002 = vpack.c.b16 %v922, %v902
        %v1003 = vpack.c.b16 %v923, %v903
        %v1004 = vpack.c.b16 %v924, %v904
        %v1005 = vpack.c.b16 %v925, %v905
        %v1006 = vpack.c.b16 %v926, %v906
        %v1007 = vpack.c.b16 %v927, %v907
        %v1008 = vpack.c.b16 %v928, %v908
        %v1009 = vpack.c.b16 %v929, %v909
        %v1010 = vpack.c.b16 %v930, %v910
        %v1011 = vpack.c.b16 %v931, %v911
        %v1012 = vpack.c.b16 %v932, %v912
        %v1013 = vpack.c.b16 %v933, %v913
        %v1014 = vpack.c.b16 %v934, %v914
        %v1015 = vpack.c.b16 %v935, %v915
        %v1016 = vpack.c.b16 %v936, %v916
        %v1017 = vpack.c.b16 %v937, %v917
        %v1018 = vpack.c.b16 %v938, %v918
        %v1019 = vpack.c.b16 %v939, %v919
        %v1101 = vsel %vm533, %v573, 0
        %1103 = vmatpush.bf16.msra.mxu0 0
        %1104 = vmatpush.bf16.msra.mxu0 0
        %1105 = vmatpush.bf16.msra.mxu0 0
        %1106 = vmatpush.bf16.msra.mxu0 0
        %1107 = vmatpush.bf16.msra.mxu0 %v1000
        %1108 = vmatpush.bf16.msra.mxu0 %v980
        %1109 = vmatpush.bf16.msra.mxu0 %v960
        %1110 = vmatpush.bf16.msra.mxu0 %v940
        %1111 = vmatmul.bf16.gmra.mxu0 %v1101
        %v1112 = vpop.f32.mrf.mxu0
        %v1113 = vadd.f32 %v660, %v1112
        %v1114 = vpop.f32.mrf.mxu0
        %1115 = vdwg.mxu0
        %1116 = vmatpush.bf16.msra.mxu0 0
        %1117 = vmatpush.bf16.msra.mxu0 0
        %1118 = vmatpush.bf16.msra.mxu0 0
        %1119 = vmatpush.bf16.msra.mxu0 0
        %1120 = vmatpush.bf16.msra.mxu0 %v1001
        %1121 = vmatpush.bf16.msra.mxu0 %v981
        %1122 = vmatpush.bf16.msra.mxu0 %v961
        %1123 = vmatpush.bf16.msra.mxu0 %v941
        %1124 = vmatmul.bf16.gmra.mxu0 %v1101
        %v1125 = vpop.f32.mrf.mxu0
        %v1126 = vadd.f32 %v661, %v1125
        %v1127 = vpop.f32.mrf.mxu0
        %1128 = vdwg.mxu0
        %1129 = vmatpush.bf16.msra.mxu0 0
        %1130 = vmatpush.bf16.msra.mxu0 0
        %1131 = vmatpush.bf16.msra.mxu0 0
        %1132 = vmatpush.bf16.msra.mxu0 0
        %1133 = vmatpush.bf16.msra.mxu0 %v1002
        %1134 = vmatpush.bf16.msra.mxu0 %v982
        %1135 = vmatpush.bf16.msra.mxu0 %v962
        %1136 = vmatpush.bf16.msra.mxu0 %v942
        %1137 = vmatmul.bf16.gmra.mxu0 %v1101
        %v1138 = vpop.f32.mrf.mxu0
        %v1139 = vadd.f32 %v662, %v1138
        %v1140 = vpop.f32.mrf.mxu0
        %1141 = vdwg.mxu0
        %1142 = vmatpush.bf16.msra.mxu0 0
        %1143 = vmatpush.bf16.msra.mxu0 0
        %1144 = vmatpush.bf16.msra.mxu0 0
        %1145 = vmatpush.bf16.msra.mxu0 0
        %1146 = vmatpush.bf16.msra.mxu0 %v1003
        %1147 = vmatpush.bf16.msra.mxu0 %v983
        %1148 = vmatpush.bf16.msra.mxu0 %v963
        %1149 = vmatpush.bf16.msra.mxu0 %v943
        %1150 = vmatmul.bf16.gmra.mxu0 %v1101
        %v1151 = vpop.f32.mrf.mxu0
        %v1152 = vadd.f32 %v663, %v1151
        %v1153 = vpop.f32.mrf.mxu0
        %1154 = vdwg.mxu0
        %1155 = vmatpush.bf16.msra.mxu0 0
        %1156 = vmatpush.bf16.msra.mxu0 0
        %1157 = vmatpush.bf16.msra.mxu0 0
        %1158 = vmatpush.bf16.msra.mxu0 0
        %1159 = vmatpush.bf16.msra.mxu0 %v1004
        %1160 = vmatpush.bf16.msra.mxu0 %v984
        %1161 = vmatpush.bf16.msra.mxu0 %v964
        %1162 = vmatpush.bf16.msra.mxu0 %v944
        %1163 = vmatmul.bf16.gmra.mxu0 %v1101
        %v1164 = vpop.f32.mrf.mxu0
        %v1165 = vadd.f32 %v664, %v1164
        %v1166 = vpop.f32.mrf.mxu0
        %1167 = vdwg.mxu0
        %1168 = vmatpush.bf16.msra.mxu0 0
        %1169 = vmatpush.bf16.msra.mxu0 0
        %1170 = vmatpush.bf16.msra.mxu0 0
        %1171 = vmatpush.bf16.msra.mxu0 0
        %1172 = vmatpush.bf16.msra.mxu0 %v1005
        %1173 = vmatpush.bf16.msra.mxu0 %v985
        %1174 = vmatpush.bf16.msra.mxu0 %v965
        %1175 = vmatpush.bf16.msra.mxu0 %v945
        %1176 = vmatmul.bf16.gmra.mxu0 %v1101
        %v1177 = vpop.f32.mrf.mxu0
        %v1178 = vadd.f32 %v665, %v1177
        %v1179 = vpop.f32.mrf.mxu0
        %1180 = vdwg.mxu0
        %1181 = vmatpush.bf16.msra.mxu0 0
        %1182 = vmatpush.bf16.msra.mxu0 0
        %1183 = vmatpush.bf16.msra.mxu0 0
        %1184 = vmatpush.bf16.msra.mxu0 0
        %1185 = vmatpush.bf16.msra.mxu0 %v1006
        %1186 = vmatpush.bf16.msra.mxu0 %v986
        %1187 = vmatpush.bf16.msra.mxu0 %v966
        %1188 = vmatpush.bf16.msra.mxu0 %v946
        %1189 = vmatmul.bf16.gmra.mxu0 %v1101
        %v1190 = vpop.f32.mrf.mxu0
        %v1191 = vadd.f32 %v666, %v1190
        %v1192 = vpop.f32.mrf.mxu0
        %1193 = vdwg.mxu0
        %1194 = vmatpush.bf16.msra.mxu0 0
        %1195 = vmatpush.bf16.msra.mxu0 0
        %1196 = vmatpush.bf16.msra.mxu0 0
        %1197 = vmatpush.bf16.msra.mxu0 0
        %1198 = vmatpush.bf16.msra.mxu0 %v1007
        %1199 = vmatpush.bf16.msra.mxu0 %v987
        %1200 = vmatpush.bf16.msra.mxu0 %v967
        %1201 = vmatpush.bf16.msra.mxu0 %v947
        %1202 = vmatmul.bf16.gmra.mxu0 %v1101
        %v1203 = vpop.f32.mrf.mxu0
        %v1204 = vadd.f32 %v667, %v1203
        %v1205 = vpop.f32.mrf.mxu0
        %1206 = vdwg.mxu0
        %1207 = vmatpush.bf16.msra.mxu0 0
        %1208 = vmatpush.bf16.msra.mxu0 0
        %1209 = vmatpush.bf16.msra.mxu0 0
        %1210 = vmatpush.bf16.msra.mxu0 0
        %1211 = vmatpush.bf16.msra.mxu0 %v1008
        %1212 = vmatpush.bf16.msra.mxu0 %v988
        %1213 = vmatpush.bf16.msra.mxu0 %v968
        %1214 = vmatpush.bf16.msra.mxu0 %v948
        %1215 = vmatmul.bf16.gmra.mxu0 %v1101
        %v1216 = vpop.f32.mrf.mxu0
        %v1217 = vadd.f32 %v668, %v1216
        %v1218 = vpop.f32.mrf.mxu0
        %1219 = vdwg.mxu0
        %1220 = vmatpush.bf16.msra.mxu0 0
        %1221 = vmatpush.bf16.msra.mxu0 0
        %1222 = vmatpush.bf16.msra.mxu0 0
        %1223 = vmatpush.bf16.msra.mxu0 0
        %1224 = vmatpush.bf16.msra.mxu0 %v1009
        %1225 = vmatpush.bf16.msra.mxu0 %v989
        %1226 = vmatpush.bf16.msra.mxu0 %v969
        %1227 = vmatpush.bf16.msra.mxu0 %v949
        %1228 = vmatmul.bf16.gmra.mxu0 %v1101
        %v1229 = vpop.f32.mrf.mxu0
        %v1230 = vadd.f32 %v669, %v1229
        %v1231 = vpop.f32.mrf.mxu0
        %1232 = vdwg.mxu0
        %1233 = vmatpush.bf16.msra.mxu0 0
        %1234 = vmatpush.bf16.msra.mxu0 0
        %1235 = vmatpush.bf16.msra.mxu0 0
        %1236 = vmatpush.bf16.msra.mxu0 0
        %1237 = vmatpush.bf16.msra.mxu0 %v1010
        %1238 = vmatpush.bf16.msra.mxu0 %v990
        %1239 = vmatpush.bf16.msra.mxu0 %v970
        %1240 = vmatpush.bf16.msra.mxu0 %v950
        %1241 = vmatmul.bf16.gmra.mxu0 %v1101
        %v1242 = vpop.f32.mrf.mxu0
        %v1243 = vadd.f32 %v670, %v1242
        %v1244 = vpop.f32.mrf.mxu0
        %1245 = vdwg.mxu0
        %1246 = vmatpush.bf16.msra.mxu0 0
        %1247 = vmatpush.bf16.msra.mxu0 0
        %1248 = vmatpush.bf16.msra.mxu0 0
        %1249 = vmatpush.bf16.msra.mxu0 0
        %1250 = vmatpush.bf16.msra.mxu0 %v1011
        %1251 = vmatpush.bf16.msra.mxu0 %v991
        %1252 = vmatpush.bf16.msra.mxu0 %v971
        %1253 = vmatpush.bf16.msra.mxu0 %v951
        %1254 = vmatmul.bf16.gmra.mxu0 %v1101
        %v1255 = vpop.f32.mrf.mxu0
        %v1256 = vadd.f32 %v671, %v1255
        %v1257 = vpop.f32.mrf.mxu0
        %1258 = vdwg.mxu0
        %1259 = vmatpush.bf16.msra.mxu0 0
        %1260 = vmatpush.bf16.msra.mxu0 0
        %1261 = vmatpush.bf16.msra.mxu0 0
        %1262 = vmatpush.bf16.msra.mxu0 0
        %1263 = vmatpush.bf16.msra.mxu0 %v1012
        %1264 = vmatpush.bf16.msra.mxu0 %v992
        %1265 = vmatpush.bf16.msra.mxu0 %v972
        %1266 = vmatpush.bf16.msra.mxu0 %v952
        %1267 = vmatmul.bf16.gmra.mxu0 %v1101
        %v1268 = vpop.f32.mrf.mxu0
        %v1269 = vadd.f32 %v672, %v1268
        %v1270 = vpop.f32.mrf.mxu0
        %1271 = vdwg.mxu0
        %1272 = vmatpush.bf16.msra.mxu0 0
        %1273 = vmatpush.bf16.msra.mxu0 0
        %1274 = vmatpush.bf16.msra.mxu0 0
        %1275 = vmatpush.bf16.msra.mxu0 0
        %1276 = vmatpush.bf16.msra.mxu0 %v1013
        %1277 = vmatpush.bf16.msra.mxu0 %v993
        %1278 = vmatpush.bf16.msra.mxu0 %v973
        %1279 = vmatpush.bf16.msra.mxu0 %v953
        %1280 = vmatmul.bf16.gmra.mxu0 %v1101
        %v1281 = vpop.f32.mrf.mxu0
        %v1282 = vadd.f32 %v673, %v1281
        %v1283 = vpop.f32.mrf.mxu0
        %1284 = vdwg.mxu0
        %1285 = vmatpush.bf16.msra.mxu0 0
        %1286 = vmatpush.bf16.msra.mxu0 0
        %1287 = vmatpush.bf16.msra.mxu0 0
        %1288 = vmatpush.bf16.msra.mxu0 0
        %1289 = vmatpush.bf16.msra.mxu0 %v1014
        %1290 = vmatpush.bf16.msra.mxu0 %v994
        %1291 = vmatpush.bf16.msra.mxu0 %v974
        %1292 = vmatpush.bf16.msra.mxu0 %v954
        %1293 = vmatmul.bf16.gmra.mxu0 %v1101
        %v1294 = vpop.f32.mrf.mxu0
        %v1295 = vadd.f32 %v674, %v1294
        %v1296 = vpop.f32.mrf.mxu0
        %1297 = vdwg.mxu0
        %1298 = vmatpush.bf16.msra.mxu0 0
        %1299 = vmatpush.bf16.msra.mxu0 0
        %1300 = vmatpush.bf16.msra.mxu0 0
        %1301 = vmatpush.bf16.msra.mxu0 0
        %1302 = vmatpush.bf16.msra.mxu0 %v1015
        %1303 = vmatpush.bf16.msra.mxu0 %v995
        %1304 = vmatpush.bf16.msra.mxu0 %v975
        %1305 = vmatpush.bf16.msra.mxu0 %v955
        %1306 = vmatmul.bf16.gmra.mxu0 %v1101
        %v1307 = vpop.f32.mrf.mxu0
        %v1308 = vadd.f32 %v675, %v1307
        %v1309 = vpop.f32.mrf.mxu0
        %1310 = vdwg.mxu0
        %1311 = vmatpush.bf16.msra.mxu0 0
        %1312 = vmatpush.bf16.msra.mxu0 0
        %1313 = vmatpush.bf16.msra.mxu0 0
        %1314 = vmatpush.bf16.msra.mxu0 0
        %1315 = vmatpush.bf16.msra.mxu0 %v1016
        %1316 = vmatpush.bf16.msra.mxu0 %v996
        %1317 = vmatpush.bf16.msra.mxu0 %v976
        %1318 = vmatpush.bf16.msra.mxu0 %v956
        %1319 = vmatmul.bf16.gmra.mxu0 %v1101
        %v1320 = vpop.f32.mrf.mxu0
        %v1321 = vadd.f32 %v676, %v1320
        %v1322 = vpop.f32.mrf.mxu0
        %1323 = vdwg.mxu0
        %1324 = vmatpush.bf16.msra.mxu0 0
        %1325 = vmatpush.bf16.msra.mxu0 0
        %1326 = vmatpush.bf16.msra.mxu0 0
        %1327 = vmatpush.bf16.msra.mxu0 0
        %1328 = vmatpush.bf16.msra.mxu0 %v1017
        %1329 = vmatpush.bf16.msra.mxu0 %v997
        %1330 = vmatpush.bf16.msra.mxu0 %v977
        %1331 = vmatpush.bf16.msra.mxu0 %v957
        %1332 = vmatmul.bf16.gmra.mxu0 %v1101
        %v1333 = vpop.f32.mrf.mxu0
        %v1334 = vadd.f32 %v677, %v1333
        %v1335 = vpop.f32.mrf.mxu0
        %1336 = vdwg.mxu0
        %1337 = vmatpush.bf16.msra.mxu0 0
        %1338 = vmatpush.bf16.msra.mxu0 0
        %1339 = vmatpush.bf16.msra.mxu0 0
        %1340 = vmatpush.bf16.msra.mxu0 0
        %1341 = vmatpush.bf16.msra.mxu0 %v1018
        %1342 = vmatpush.bf16.msra.mxu0 %v998
        %1343 = vmatpush.bf16.msra.mxu0 %v978
        %1344 = vmatpush.bf16.msra.mxu0 %v958
        %1345 = vmatmul.bf16.gmra.mxu0 %v1101
        %v1346 = vpop.f32.mrf.mxu0
        %v1347 = vadd.f32 %v678, %v1346
        %v1348 = vpop.f32.mrf.mxu0
        %1349 = vdwg.mxu0
        %1350 = vmatpush.bf16.msra.mxu0 0
        %1351 = vmatpush.bf16.msra.mxu0 0
        %1352 = vmatpush.bf16.msra.mxu0 0
        %1353 = vmatpush.bf16.msra.mxu0 0
        %1354 = vmatpush.bf16.msra.mxu0 %v1019
        %1355 = vmatpush.bf16.msra.mxu0 %v999
        %1356 = vmatpush.bf16.msra.mxu0 %v979
        %1357 = vmatpush.bf16.msra.mxu0 %v959
        %1358 = vmatmul.bf16.gmra.mxu0 %v1101
        %v1359 = vpop.f32.mrf.mxu0
        %v1360 = vadd.f32 %v679, %v1359
        %v1361 = vpop.f32.mrf.mxu0
        %1362 = vdwg.mxu0
        %v1363 = vld [vmem:[%s522] sm:$0xff]
        %v1364 = vld [vmem:[%s526] sm:$0xff]
        %v1365 = vmul.f32 %v1113, %v1363
        %v1366 = vmul.f32 %v1126, %v1363
        %v1367 = vmul.f32 %v1139, %v1363
        %v1368 = vmul.f32 %v1152, %v1363
        %v1369 = vmul.f32 %v1165, %v1364
        %v1370 = vmul.f32 %v1178, %v1364
        %v1371 = vmul.f32 %v1191, %v1364
        %v1372 = vmul.f32 %v1204, %v1364
        %v1373 = vadd.f32 %v1365, %v1369
        %v1374 = vadd.f32 %v1366, %v1370
        %v1375 = vadd.f32 %v1367, %v1371
        %v1376 = vadd.f32 %v1368, %v1372
        %v1377 = vmul.f32 %v1217, %v1363
        %v1378 = vmul.f32 %v1230, %v1363
        %v1379 = vmul.f32 %v1243, %v1363
        %v1380 = vmul.f32 %v1256, %v1363
        %v1381 = vmul.f32 %v1269, %v1364
        %v1382 = vmul.f32 %v1282, %v1364
        %v1383 = vmul.f32 %v1295, %v1364
        %v1384 = vmul.f32 %v1308, %v1364
        %v1385 = vadd.f32 %v1377, %v1381
        %v1386 = vadd.f32 %v1378, %v1382
        %v1387 = vadd.f32 %v1379, %v1383
        %v1388 = vadd.f32 %v1380, %v1384
        %v1389 = vmul.f32 %v1373, 0.25
        %v1390 = vmul.f32 %v1374, 0.25
        %v1391 = vmul.f32 %v1375, 0.25
        %v1392 = vmul.f32 %v1376, 0.25
        %v1393 = vpack.c.bf16 %v1390, %v1389
        %v1394 = vpack.c.bf16 %v1392, %v1391
        %v1395 = vpack.c.bf16 %v1386, %v1385
        %v1396 = vpack.c.bf16 %v1388, %v1387
        %v1397 = vpack.c.bf16 %v1334, %v1321
        %v1398 = vpack.c.bf16 %v1360, %v1347
        %v1399 = vld [vmem:[%s530] sm:$0xff]
        %1400 = vmatpush.bf16.xpose.msra.mxu0 0
        %1401 = vmatpush.bf16.xpose.msra.mxu0 0
        %1402 = vmatpush.bf16.xpose.msra.mxu0 0
        %1403 = vmatpush.bf16.xpose.msra.mxu0 0
        %1404 = vmatpush.bf16.xpose.msra.mxu0 0
        %1405 = vmatpush.bf16.xpose.msra.mxu0 0
        %1406 = vmatpush.bf16.xpose.msra.mxu0 0
        %1407 = vmatpush.bf16.xpose.msra.mxu0 %v1395
        %1408 = vmatmul.bf16.gmra.mxu0 %v1393
        %v1409 = vpop.f32.mrf.mxu0
        %v1410 = vadd.f32 %v1399, %v1409
        %v1411 = vpop.f32.mrf.mxu0
        %1412 = vdwg.mxu0
        %v1414 = vunpack.c.h.b16 %v1393
        %v1415 = vpack.c.b16 %v1414, %v1414
        %v1418 = vunpack.c.h.b16 %v1395
        %v1419 = vpack.c.b16 %v1418, %v1418
        %1421 = vmatpush.bf16.xpose.msra.mxu0 0
        %1422 = vmatpush.bf16.xpose.msra.mxu0 0
        %1423 = vmatpush.bf16.xpose.msra.mxu0 0
        %1424 = vmatpush.bf16.xpose.msra.mxu0 0
        %1425 = vmatpush.bf16.xpose.msra.mxu0 0
        %1426 = vmatpush.bf16.xpose.msra.mxu0 0
        %1427 = vmatpush.bf16.xpose.msra.mxu0 0
        %1428 = vmatpush.bf16.xpose.msra.mxu0 %v1419
        %1429 = vmatmul.bf16.gmra.mxu0 %v1415
        %v1430 = vpop.f32.mrf.mxu0
        %v1431 = vadd.f32 %v1399, %v1430
        %v1432 = vpop.f32.mrf.mxu0
        %1433 = vdwg.mxu0
        %1434 = vmatpush.bf16.xpose.msra.mxu0 0
        %1435 = vmatpush.bf16.xpose.msra.mxu0 0
        %1436 = vmatpush.bf16.xpose.msra.mxu0 0
        %1437 = vmatpush.bf16.xpose.msra.mxu0 0
        %1438 = vmatpush.bf16.xpose.msra.mxu0 0
        %1439 = vmatpush.bf16.xpose.msra.mxu0 0
        %1440 = vmatpush.bf16.xpose.msra.mxu0 0
        %1441 = vmatpush.bf16.xpose.msra.mxu0 %v1396
        %1442 = vmatmul.bf16.gmra.mxu0 %v1394
        %v1443 = vpop.f32.mrf.mxu0
        %v1444 = vadd.f32 %v1399, %v1443
        %v1445 = vpop.f32.mrf.mxu0
        %1446 = vdwg.mxu0
        %v1448 = vunpack.c.h.b16 %v1394
        %v1449 = vpack.c.b16 %v1448, %v1448
        %v1452 = vunpack.c.h.b16 %v1396
        %v1453 = vpack.c.b16 %v1452, %v1452
        %1455 = vmatpush.bf16.xpose.msra.mxu0 0
        %1456 = vmatpush.bf16.xpose.msra.mxu0 0
        %1457 = vmatpush.bf16.xpose.msra.mxu0 0
        %1458 = vmatpush.bf16.xpose.msra.mxu0 0
        %1459 = vmatpush.bf16.xpose.msra.mxu0 0
        %1460 = vmatpush.bf16.xpose.msra.mxu0 0
        %1461 = vmatpush.bf16.xpose.msra.mxu0 0
        %1462 = vmatpush.bf16.xpose.msra.mxu0 %v1453
        %1463 = vmatmul.bf16.gmra.mxu0 %v1449
        %v1464 = vpop.f32.mrf.mxu0
        %v1465 = vadd.f32 %v1399, %v1464
        %v1466 = vpop.f32.mrf.mxu0
        %1467 = vdwg.mxu0
        %vm1468 = vcmask 64512
        %v1469 = vsel %vm1468, %v1410, -inf
        %1470 = vmax.xlane.f32.xlu0 %v1469
        %v1471 = vpop.xlane.xlu0 %1470
        %v1472 = vsel %vm1468, %v1431, -inf
        %1473 = vmax.xlane.f32.xlu0 %v1472
        %v1474 = vpop.xlane.xlu0 %1473
        %v1475 = vsel %vm1468, %v1444, -inf
        %1476 = vmax.xlane.f32.xlu0 %v1475
        %v1477 = vpop.xlane.xlu0 %1476
        %v1478 = vsel %vm1468, %v1465, -inf
        %1479 = vmax.xlane.f32.xlu0 %v1478
        %v1480 = vpop.xlane.xlu0 %1479
        %v1481 = vsub.f32 %v1410, %v1471
        %v1482 = vsub.f32 %v1431, %v1474
        %v1483 = vsub.f32 %v1444, %v1477
        %v1484 = vsub.f32 %v1465, %v1480
        %v1485 = vmul.f32 %v1481, 1.442695
        %v1486 = vpow.pop %v1485
        %v1487 = vmul.f32 %v1482, 1.442695
        %v1488 = vpow.pop %v1487
        %v1489 = vmul.f32 %v1483, 1.442695
        %v1490 = vpow.pop %v1489
        %v1491 = vmul.f32 %v1484, 1.442695
        %v1492 = vpow.pop %v1491
        %v1493 = vsel %vm1468, %v1486, 0.0
        %1494 = vadd.xlane.f32.xlu0 %v1493
        %v1495 = vpop.xlane.xlu0 %1494
        %v1496 = vsel %vm1468, %v1488, 0.0
        %1497 = vadd.xlane.f32.xlu0 %v1496
        %v1498 = vpop.xlane.xlu0 %1497
        %v1499 = vsel %vm1468, %v1490, 0.0
        %1500 = vadd.xlane.f32.xlu0 %v1499
        %v1501 = vpop.xlane.xlu0 %1500
        %v1502 = vsel %vm1468, %v1492, 0.0
        %1503 = vadd.xlane.f32.xlu0 %v1502
        %v1504 = vpop.xlane.xlu0 %1503
        %v1505 = vrcp.pop %v1495
        %v1506 = vrcp.pop %v1498
        %v1507 = vrcp.pop %v1501
        %v1508 = vrcp.pop %v1504
        %v1509 = vmul.f32 %v1486, %v1505
        %v1510 = vmul.f32 %v1488, %v1506
        %v1511 = vmul.f32 %v1490, %v1507
        %v1512 = vmul.f32 %v1492, %v1508
        %v1513 = vpack.c.bf16 %v1509, %v1509
        %v1514 = vpack.c.bf16 %v1510, %v1510
        %v1515 = vpack.c.bf16 %v1511, %v1511
        %v1516 = vpack.c.bf16 %v1512, %v1512
        %v1518 = vsel %vm1468, %v1513, 0
        %vm1520 = vcmask 1043456
        %v1522 = vsel %vm1520, %v1397, 0
        %1524 = vmatpush.bf16.msra.mxu0 0
        %1525 = vmatpush.bf16.msra.mxu0 0
        %1526 = vmatpush.bf16.msra.mxu0 0
        %1527 = vmatpush.bf16.msra.mxu0 0
        %1528 = vmatpush.bf16.msra.mxu0 0
        %1529 = vmatpush.bf16.msra.mxu0 0
        %1530 = vmatpush.bf16.msra.mxu0 0
        %1531 = vmatpush.bf16.msra.mxu0 %v1522
        %1532 = vmatmul.bf16.gmra.mxu0 %v1518
        %v1533 = vpop.f32.mrf.mxu0
        %v1534 = vadd.f32 0.0, %v1533
        %v1535 = vpop.f32.mrf.mxu0
        %1536 = vdwg.mxu0
        %v1538 = vunpack.c.h.b16 %v1397
        %v1539 = vpack.c.b16 %v1538, %v1538
        %v1541 = vsel %vm1468, %v1514, 0
        %v1544 = vsel %vm1520, %v1539, 0
        %1546 = vmatpush.bf16.msra.mxu0 0
        %1547 = vmatpush.bf16.msra.mxu0 0
        %1548 = vmatpush.bf16.msra.mxu0 0
        %1549 = vmatpush.bf16.msra.mxu0 0
        %1550 = vmatpush.bf16.msra.mxu0 0
        %1551 = vmatpush.bf16.msra.mxu0 0
        %1552 = vmatpush.bf16.msra.mxu0 0
        %1553 = vmatpush.bf16.msra.mxu0 %v1544
        %1554 = vmatmul.bf16.gmra.mxu0 %v1541
        %v1555 = vpop.f32.mrf.mxu0
        %v1556 = vadd.f32 0.0, %v1555
        %v1557 = vpop.f32.mrf.mxu0
        %1558 = vdwg.mxu0
        %v1560 = vsel %vm1468, %v1515, 0
        %v1563 = vsel %vm1520, %v1398, 0
        %1565 = vmatpush.bf16.msra.mxu0 0
        %1566 = vmatpush.bf16.msra.mxu0 0
        %1567 = vmatpush.bf16.msra.mxu0 0
        %1568 = vmatpush.bf16.msra.mxu0 0
        %1569 = vmatpush.bf16.msra.mxu0 0
        %1570 = vmatpush.bf16.msra.mxu0 0
        %1571 = vmatpush.bf16.msra.mxu0 0
        %1572 = vmatpush.bf16.msra.mxu0 %v1563
        %1573 = vmatmul.bf16.gmra.mxu0 %v1560
        %v1574 = vpop.f32.mrf.mxu0
        %v1575 = vadd.f32 0.0, %v1574
        %v1576 = vpop.f32.mrf.mxu0
        %1577 = vdwg.mxu0
        %v1579 = vunpack.c.h.b16 %v1398
        %v1580 = vpack.c.b16 %v1579, %v1579
        %v1582 = vsel %vm1468, %v1516, 0
        %v1585 = vsel %vm1520, %v1580, 0
        %1587 = vmatpush.bf16.msra.mxu0 0
        %1588 = vmatpush.bf16.msra.mxu0 0
        %1589 = vmatpush.bf16.msra.mxu0 0
        %1590 = vmatpush.bf16.msra.mxu0 0
        %1591 = vmatpush.bf16.msra.mxu0 0
        %1592 = vmatpush.bf16.msra.mxu0 0
        %1593 = vmatpush.bf16.msra.mxu0 0
        %1594 = vmatpush.bf16.msra.mxu0 %v1585
        %1595 = vmatmul.bf16.gmra.mxu0 %v1582
        %v1596 = vpop.f32.mrf.mxu0
        %v1597 = vadd.f32 0.0, %v1596
        %v1598 = vpop.f32.mrf.mxu0
        %1599 = vdwg.mxu0
        %v1600 = vpack.c.bf16 %v1534, %v1534
        %v1601 = vpack.c.bf16 %v1556, %v1556
        %v1602 = vpack.c.bf16 %v1575, %v1575
        %v1603 = vpack.c.bf16 %v1597, %v1597
        %v1604 = vld [vmem:[%s8] sm:$0xf]
        %v1605 = vld [vmem:[%s8 + $0x4] sm:$0xf]
        %v1606 = vld [vmem:[%s8 + $0x8] sm:$0xf]
        %v1607 = vld [vmem:[%s8 + $0xc] sm:$0xf]
        %v1608 = vld [vmem:[%s8 + $0x10] sm:$0xf]
        %v1609 = vld [vmem:[%s8 + $0x14] sm:$0xf]
        %v1610 = vld [vmem:[%s8 + $0x18] sm:$0xf]
        %v1611 = vld [vmem:[%s8 + $0x1c] sm:$0xf]
        %v1612 = vld [vmem:[%s8 + $0x20] sm:$0xf]
        %v1613 = vld [vmem:[%s8 + $0x24] sm:$0xf]
        %v1614 = vld [vmem:[%s8 + $0x28] sm:$0xf]
        %v1615 = vld [vmem:[%s8 + $0x2c] sm:$0xf]
        %v1616 = vld [vmem:[%s8 + $0x30] sm:$0xf]
        %v1617 = vld [vmem:[%s8 + $0x34] sm:$0xf]
        %v1618 = vld [vmem:[%s8 + $0x38] sm:$0xf]
        %v1619 = vld [vmem:[%s8 + $0x3c] sm:$0xf]
        %v1620 = vld [vmem:[%s8 + $0x40] sm:$0xf]
        %v1621 = vld [vmem:[%s8 + $0x44] sm:$0xf]
        %v1622 = vld [vmem:[%s8 + $0x48] sm:$0xf]
        %v1623 = vld [vmem:[%s8 + $0x4c] sm:$0xf]
        %v1624 = vld [vmem:[%s8 + $0x50] sm:$0xf]
        %v1625 = vld [vmem:[%s8 + $0x54] sm:$0xf]
        %v1626 = vld [vmem:[%s8 + $0x58] sm:$0xf]
        %v1627 = vld [vmem:[%s8 + $0x5c] sm:$0xf]
        %v1628 = vld [vmem:[%s8 + $0x60] sm:$0xf]
        %v1629 = vld [vmem:[%s8 + $0x64] sm:$0xf]
        %v1630 = vld [vmem:[%s8 + $0x68] sm:$0xf]
        %v1631 = vld [vmem:[%s8 + $0x6c] sm:$0xf]
        %v1632 = vld [vmem:[%s8 + $0x70] sm:$0xf]
        %v1633 = vld [vmem:[%s8 + $0x74] sm:$0xf]
        %v1634 = vld [vmem:[%s8 + $0x78] sm:$0xf]
        %v1635 = vld [vmem:[%s8 + $0x7c] sm:$0xf]
        %v1636 = vld [vmem:[%s8 + $0x80] sm:$0xf]
        %v1637 = vld [vmem:[%s8 + $0x84] sm:$0xf]
        %v1638 = vld [vmem:[%s8 + $0x88] sm:$0xf]
        %v1639 = vld [vmem:[%s8 + $0x8c] sm:$0xf]
        %v1640 = vld [vmem:[%s8 + $0x90] sm:$0xf]
        %v1641 = vld [vmem:[%s8 + $0x94] sm:$0xf]
        %v1642 = vld [vmem:[%s8 + $0x98] sm:$0xf]
        %v1643 = vld [vmem:[%s8 + $0x9c] sm:$0xf]
        %v1644 = vld [vmem:[%s8 + $0xa0] sm:$0xf]
        %v1645 = vld [vmem:[%s8 + $0xa4] sm:$0xf]
        %v1646 = vld [vmem:[%s8 + $0xa8] sm:$0xf]
        %v1647 = vld [vmem:[%s8 + $0xac] sm:$0xf]
        %v1648 = vld [vmem:[%s8 + $0xb0] sm:$0xf]
        %v1649 = vld [vmem:[%s8 + $0xb4] sm:$0xf]
        %v1650 = vld [vmem:[%s8 + $0xb8] sm:$0xf]
        %v1651 = vld [vmem:[%s8 + $0xbc] sm:$0xf]
        %v1652 = vld [vmem:[%s8 + $0xc0] sm:$0xf]
        %v1653 = vld [vmem:[%s8 + $0xc4] sm:$0xf]
        %v1654 = vld [vmem:[%s8 + $0xc8] sm:$0xf]
        %v1655 = vld [vmem:[%s8 + $0xcc] sm:$0xf]
        %v1656 = vld [vmem:[%s8 + $0xd0] sm:$0xf]
        %v1657 = vld [vmem:[%s8 + $0xd4] sm:$0xf]
        %v1658 = vld [vmem:[%s8 + $0xd8] sm:$0xf]
        %v1659 = vld [vmem:[%s8 + $0xdc] sm:$0xf]
        %v1660 = vld [vmem:[%s8 + $0xe0] sm:$0xf]
        %v1661 = vld [vmem:[%s8 + $0xe4] sm:$0xf]
        %v1662 = vld [vmem:[%s8 + $0xe8] sm:$0xf]
        %v1663 = vld [vmem:[%s8 + $0xec] sm:$0xf]
        %v1664 = vld [vmem:[%s8 + $0xf0] sm:$0xf]
        %v1665 = vld [vmem:[%s8 + $0xf4] sm:$0xf]
        %v1666 = vld [vmem:[%s8 + $0xf8] sm:$0xf]
        %v1667 = vld [vmem:[%s8 + $0xfc] sm:$0xf]
        %v1668 = vld [vmem:[%s9] sm:$0x1]
        %v1670 = vperm.slane %v1668, 0
        %v1736 = vunpack.c.l.b16 %v1604
        %v1737 = vunpack.c.l.b16 %v1605
        %v1738 = vunpack.c.l.b16 %v1606
        %v1739 = vunpack.c.l.b16 %v1607
        %v1740 = vunpack.c.l.b16 %v1608
        %v1741 = vunpack.c.l.b16 %v1609
        %v1742 = vunpack.c.l.b16 %v1610
        %v1743 = vunpack.c.l.b16 %v1611
        %v1744 = vunpack.c.l.b16 %v1612
        %v1745 = vunpack.c.l.b16 %v1613
        %v1746 = vunpack.c.l.b16 %v1614
        %v1747 = vunpack.c.l.b16 %v1615
        %v1748 = vunpack.c.l.b16 %v1616
        %v1749 = vunpack.c.l.b16 %v1617
        %v1750 = vunpack.c.l.b16 %v1618
        %v1751 = vunpack.c.l.b16 %v1619
        %v1752 = vunpack.c.l.b16 %v1620
        %v1753 = vunpack.c.l.b16 %v1621
        %v1754 = vunpack.c.l.b16 %v1622
        %v1755 = vunpack.c.l.b16 %v1623
        %v1756 = vunpack.c.l.b16 %v1624
        %v1757 = vunpack.c.l.b16 %v1625
        %v1758 = vunpack.c.l.b16 %v1626
        %v1759 = vunpack.c.l.b16 %v1627
        %v1760 = vunpack.c.l.b16 %v1628
        %v1761 = vunpack.c.l.b16 %v1629
        %v1762 = vunpack.c.l.b16 %v1630
        %v1763 = vunpack.c.l.b16 %v1631
        %v1764 = vunpack.c.l.b16 %v1632
        %v1765 = vunpack.c.l.b16 %v1633
        %v1766 = vunpack.c.l.b16 %v1634
        %v1767 = vunpack.c.l.b16 %v1635
        %v1768 = vunpack.c.l.b16 %v1636
        %v1769 = vunpack.c.l.b16 %v1637
        %v1770 = vunpack.c.l.b16 %v1638
        %v1771 = vunpack.c.l.b16 %v1639
        %v1772 = vunpack.c.l.b16 %v1640
        %v1773 = vunpack.c.l.b16 %v1641
        %v1774 = vunpack.c.l.b16 %v1642
        %v1775 = vunpack.c.l.b16 %v1643
        %v1776 = vunpack.c.l.b16 %v1644
        %v1777 = vunpack.c.l.b16 %v1645
        %v1778 = vunpack.c.l.b16 %v1646
        %v1779 = vunpack.c.l.b16 %v1647
        %v1780 = vunpack.c.l.b16 %v1648
        %v1781 = vunpack.c.l.b16 %v1649
        %v1782 = vunpack.c.l.b16 %v1650
        %v1783 = vunpack.c.l.b16 %v1651
        %v1784 = vunpack.c.l.b16 %v1652
        %v1785 = vunpack.c.l.b16 %v1653
        %v1786 = vunpack.c.l.b16 %v1654
        %v1787 = vunpack.c.l.b16 %v1655
        %v1788 = vunpack.c.l.b16 %v1656
        %v1789 = vunpack.c.l.b16 %v1657
        %v1790 = vunpack.c.l.b16 %v1658
        %v1791 = vunpack.c.l.b16 %v1659
        %v1792 = vunpack.c.l.b16 %v1660
        %v1793 = vunpack.c.l.b16 %v1661
        %v1794 = vunpack.c.l.b16 %v1662
        %v1795 = vunpack.c.l.b16 %v1663
        %v1796 = vunpack.c.l.b16 %v1664
        %v1797 = vunpack.c.l.b16 %v1665
        %v1798 = vunpack.c.l.b16 %v1666
        %v1799 = vunpack.c.l.b16 %v1667
        %v1800 = vpack.c.b16 %v1737, %v1736
        %v1801 = vpack.c.b16 %v1739, %v1738
        %v1802 = vpack.c.b16 %v1741, %v1740
        %v1803 = vpack.c.b16 %v1743, %v1742
        %v1804 = vpack.c.b16 %v1745, %v1744
        %v1805 = vpack.c.b16 %v1747, %v1746
        %v1806 = vpack.c.b16 %v1749, %v1748
        %v1807 = vpack.c.b16 %v1751, %v1750
        %v1808 = vpack.c.b16 %v1753, %v1752
        %v1809 = vpack.c.b16 %v1755, %v1754
        %v1810 = vpack.c.b16 %v1757, %v1756
        %v1811 = vpack.c.b16 %v1759, %v1758
        %v1812 = vpack.c.b16 %v1761, %v1760
        %v1813 = vpack.c.b16 %v1763, %v1762
        %v1814 = vpack.c.b16 %v1765, %v1764
        %v1815 = vpack.c.b16 %v1767, %v1766
        %v1816 = vpack.c.b16 %v1769, %v1768
        %v1817 = vpack.c.b16 %v1771, %v1770
        %v1818 = vpack.c.b16 %v1773, %v1772
        %v1819 = vpack.c.b16 %v1775, %v1774
        %v1820 = vpack.c.b16 %v1777, %v1776
        %v1821 = vpack.c.b16 %v1779, %v1778
        %v1822 = vpack.c.b16 %v1781, %v1780
        %v1823 = vpack.c.b16 %v1783, %v1782
        %v1824 = vpack.c.b16 %v1785, %v1784
        %v1825 = vpack.c.b16 %v1787, %v1786
        %v1826 = vpack.c.b16 %v1789, %v1788
        %v1827 = vpack.c.b16 %v1791, %v1790
        %v1828 = vpack.c.b16 %v1793, %v1792
        %v1829 = vpack.c.b16 %v1795, %v1794
        %v1830 = vpack.c.b16 %v1797, %v1796
        %v1831 = vpack.c.b16 %v1799, %v1798
        %1864 = vmatpush.bf16.msra.mxu0 %v1807
        %1865 = vmatpush.bf16.msra.mxu0 %v1806
        %1866 = vmatpush.bf16.msra.mxu0 %v1805
        %1867 = vmatpush.bf16.msra.mxu0 %v1804
        %1868 = vmatpush.bf16.msra.mxu0 %v1803
        %1869 = vmatpush.bf16.msra.mxu0 %v1802
        %1870 = vmatpush.bf16.msra.mxu0 %v1801
        %1871 = vmatpush.bf16.msra.mxu0 %v1800
        %1872 = vmatmul.bf16.gmra.mxu0 %v1600
        %v1873 = vpop.f32.mrf.mxu0
        %v1874 = vadd.f32 %v1670, %v1873
        %v1875 = vpop.f32.mrf.mxu0
        %1876 = vdwg.mxu0
        %1877 = vmatpush.bf16.msra.mxu0 %v1815
        %1878 = vmatpush.bf16.msra.mxu0 %v1814
        %1879 = vmatpush.bf16.msra.mxu0 %v1813
        %1880 = vmatpush.bf16.msra.mxu0 %v1812
        %1881 = vmatpush.bf16.msra.mxu0 %v1811
        %1882 = vmatpush.bf16.msra.mxu0 %v1810
        %1883 = vmatpush.bf16.msra.mxu0 %v1809
        %1884 = vmatpush.bf16.msra.mxu0 %v1808
        %1885 = vmatmul.bf16.gmra.mxu0 %v1601
        %v1886 = vpop.f32.mrf.mxu0
        %v1887 = vadd.f32 %v1874, %v1886
        %v1888 = vpop.f32.mrf.mxu0
        %1889 = vdwg.mxu0
        %1890 = vmatpush.bf16.msra.mxu0 %v1823
        %1891 = vmatpush.bf16.msra.mxu0 %v1822
        %1892 = vmatpush.bf16.msra.mxu0 %v1821
        %1893 = vmatpush.bf16.msra.mxu0 %v1820
        %1894 = vmatpush.bf16.msra.mxu0 %v1819
        %1895 = vmatpush.bf16.msra.mxu0 %v1818
        %1896 = vmatpush.bf16.msra.mxu0 %v1817
        %1897 = vmatpush.bf16.msra.mxu0 %v1816
        %1898 = vmatmul.bf16.gmra.mxu0 %v1602
        %v1899 = vpop.f32.mrf.mxu0
        %v1900 = vadd.f32 %v1887, %v1899
        %v1901 = vpop.f32.mrf.mxu0
        %1902 = vdwg.mxu0
        %1903 = vmatpush.bf16.msra.mxu0 %v1831
        %1904 = vmatpush.bf16.msra.mxu0 %v1830
        %1905 = vmatpush.bf16.msra.mxu0 %v1829
        %1906 = vmatpush.bf16.msra.mxu0 %v1828
        %1907 = vmatpush.bf16.msra.mxu0 %v1827
        %1908 = vmatpush.bf16.msra.mxu0 %v1826
        %1909 = vmatpush.bf16.msra.mxu0 %v1825
        %1910 = vmatpush.bf16.msra.mxu0 %v1824
        %1911 = vmatmul.bf16.gmra.mxu0 %v1603
        %v1912 = vpop.f32.mrf.mxu0
        %v1913 = vadd.f32 %v1900, %v1912
        %v1914 = vpop.f32.mrf.mxu0
        %1915 = vdwg.mxu0
        %v1916 = vld [vmem:[%s10] sm:$0xf]
        %v1917 = vld [vmem:[%s10 + $0x4] sm:$0xf]
        %v1918 = vld [vmem:[%s10 + $0x8] sm:$0xf]
        %v1919 = vld [vmem:[%s10 + $0xc] sm:$0xf]
        %v1920 = vld [vmem:[%s10 + $0x10] sm:$0xf]
        %v1921 = vld [vmem:[%s10 + $0x14] sm:$0xf]
        %v1922 = vld [vmem:[%s10 + $0x18] sm:$0xf]
        %v1923 = vld [vmem:[%s10 + $0x1c] sm:$0xf]
        %v1924 = vld [vmem:[%s11] sm:$0x1]
        %v1926 = vperm.slane %v1924, 0
        %v1936 = vunpack.c.l.b16 %v1916
        %v1937 = vunpack.c.l.b16 %v1917
        %v1938 = vunpack.c.l.b16 %v1918
        %v1939 = vunpack.c.l.b16 %v1919
        %v1940 = vunpack.c.l.b16 %v1920
        %v1941 = vunpack.c.l.b16 %v1921
        %v1942 = vunpack.c.l.b16 %v1922
        %v1943 = vunpack.c.l.b16 %v1923
        %v1944 = vpack.c.b16 %v1937, %v1936
        %v1945 = vpack.c.b16 %v1939, %v1938
        %v1946 = vpack.c.b16 %v1941, %v1940
        %v1947 = vpack.c.b16 %v1943, %v1942
        %1952 = vmatpush.bf16.msra.mxu0 0
        %1953 = vmatpush.bf16.msra.mxu0 0
        %1954 = vmatpush.bf16.msra.mxu0 0
        %1955 = vmatpush.bf16.msra.mxu0 0
        %1956 = vmatpush.bf16.msra.mxu0 %v1947
        %1957 = vmatpush.bf16.msra.mxu0 %v1946
        %1958 = vmatpush.bf16.msra.mxu0 %v1945
        %1959 = vmatpush.bf16.msra.mxu0 %v1944
        %1960 = vmatmul.bf16.gmra.mxu0 %v1101
        %v1961 = vpop.f32.mrf.mxu0
        %v1962 = vadd.f32 %v1926, %v1961
        %v1963 = vpop.f32.mrf.mxu0
        %1964 = vdwg.mxu0
        %v1965 = vmul.f32 %v1962, 0.5
        %v1966 = vmul.f32 %v1962, 0.044715
        %v1967 = vmul.f32 %v1966, %v1962
        %v1968 = vmul.f32 %v1967, %v1962
        %v1969 = vadd.f32 %v1962, %v1968
        %v1970 = vmul.f32 %v1969, 0.7978846
        %v1971 = vtanh.pop %v1970
        %v1972 = vadd.f32 %v1971, 1.0
        %v1973 = vmul.f32 %v1965, %v1972
        %v1974 = vpack.c.bf16 %v1973, %v1973
        %v1975 = vld [vmem:[%s12] sm:$0xf]
        %v1976 = vld [vmem:[%s12 + $0x4] sm:$0xf]
        %v1977 = vld [vmem:[%s12 + $0x8] sm:$0xf]
        %v1978 = vld [vmem:[%s12 + $0xc] sm:$0xf]
        %v1979 = vld [vmem:[%s12 + $0x10] sm:$0xf]
        %v1980 = vld [vmem:[%s12 + $0x14] sm:$0xf]
        %v1981 = vld [vmem:[%s12 + $0x18] sm:$0xf]
        %v1982 = vld [vmem:[%s12 + $0x1c] sm:$0xf]
        %v1983 = vld [vmem:[%s12 + $0x20] sm:$0xf]
        %v1984 = vld [vmem:[%s12 + $0x24] sm:$0xf]
        %v1985 = vld [vmem:[%s12 + $0x28] sm:$0xf]
        %v1986 = vld [vmem:[%s12 + $0x2c] sm:$0xf]
        %v1987 = vld [vmem:[%s12 + $0x30] sm:$0xf]
        %v1988 = vld [vmem:[%s12 + $0x34] sm:$0xf]
        %v1989 = vld [vmem:[%s12 + $0x38] sm:$0xf]
        %v1990 = vld [vmem:[%s12 + $0x3c] sm:$0xf]
        %v1991 = vld [vmem:[%s13] sm:$0x1]
        %v1993 = vperm.slane %v1991, 0
        %v2011 = vunpack.c.l.b16 %v1975
        %v2012 = vunpack.c.l.b16 %v1976
        %v2013 = vunpack.c.l.b16 %v1977
        %v2014 = vunpack.c.l.b16 %v1978
        %v2015 = vunpack.c.l.b16 %v1979
        %v2016 = vunpack.c.l.b16 %v1980
        %v2017 = vunpack.c.l.b16 %v1981
        %v2018 = vunpack.c.l.b16 %v1982
        %v2019 = vunpack.c.l.b16 %v1983
        %v2020 = vunpack.c.l.b16 %v1984
        %v2021 = vunpack.c.l.b16 %v1985
        %v2022 = vunpack.c.l.b16 %v1986
        %v2023 = vunpack.c.l.b16 %v1987
        %v2024 = vunpack.c.l.b16 %v1988
        %v2025 = vunpack.c.l.b16 %v1989
        %v2026 = vunpack.c.l.b16 %v1990
        %v2027 = vpack.c.b16 %v2012, %v2011
        %v2028 = vpack.c.b16 %v2014, %v2013
        %v2029 = vpack.c.b16 %v2016, %v2015
        %v2030 = vpack.c.b16 %v2018, %v2017
        %v2031 = vpack.c.b16 %v2020, %v2019
        %v2032 = vpack.c.b16 %v2022, %v2021
        %v2033 = vpack.c.b16 %v2024, %v2023
        %v2034 = vpack.c.b16 %v2026, %v2025
        %2043 = vmatpush.bf16.msra.mxu0 %v2034
        %2044 = vmatpush.bf16.msra.mxu0 %v2033
        %2045 = vmatpush.bf16.msra.mxu0 %v2032
        %2046 = vmatpush.bf16.msra.mxu0 %v2031
        %2047 = vmatpush.bf16.msra.mxu0 %v2030
        %2048 = vmatpush.bf16.msra.mxu0 %v2029
        %2049 = vmatpush.bf16.msra.mxu0 %v2028
        %2050 = vmatpush.bf16.msra.mxu0 %v2027
        %2051 = vmatmul.bf16.gmra.mxu0 %v1974
        %v2052 = vpop.f32.mrf.mxu0
        %v2053 = vadd.f32 %v1993, %v2052
        %v2054 = vpop.f32.mrf.mxu0
        %2055 = vdwg.mxu0
        %v2056 = vadd.f32 %v1913, %v2053
        %v2057 = vadd.f32 %v2056, %v532
        %2058 = vst.msk [vmem:[%s514] sm:$0xff] %vm533, %v2057
        %s2059 = sand.u32 %s351, 1
        %s2060 = scalar_lea.sflag [#allocation4], %s2059
        %s2061 = sand.u32 %s351, 1
        %s2062 = smul.addr %s2061, 8
        %s2063 = scalar_lea.vmem [#allocation5], %s2062
        // Predicated region
        $region81: #{tpu_custom_call.1} parent=75 // pred_check
          %p2064 = pneg %p361
        $region82: #{tpu_custom_call.1} parent=75 // pred_check_branch
          %2066 = sbr.rel (%p2064) target = $region84
        $region83: #{tpu_custom_call.1} parent=75 // pred_region
          %2068 = vsyncadd %s2060, 0
          %s2069 = smul.addr %s29, 8
          %s2070 = scalar_lea.hbm %s14, %s2069
          %s2072 = sshll.u32 %s2063, 4
          %s2073 = int_to_ptr.vmem [resolvable:$true] %s2072
          %s2074 = sshll.u32 %s2070, 4
          %s2075 = int_to_ptr.hbm [resolvable:$true] %s2074
          %2077 = dma.vmem_to_hbm [thread:$0]  %s2073, 128, %s2075, %s2060
        $region84: #{tpu_custom_call.1} parent=75 // pred_fallthru
          _
      $region76: #{tpu_custom_call.1} parent=5 // pred_fallthru
        _
      %p2078 = scmp.le.s32.totalorder 2, %s24
      // Predicated region
      $region85: #{tpu_custom_call.1} parent=5 // pred_check
        %p2079 = pneg %p2078
      $region86: #{tpu_custom_call.1} parent=5 // pred_check_branch
        %2081 = sbr.rel (%p2079) target = $region88
      $region87: #{tpu_custom_call.1} parent=5 // pred_region
        %s2082 = ssub.s32 %s24, 2
        // Predicated region
        $region89: #{tpu_custom_call.1} parent=87 // pred_check
          %p2083 = pneg %p367
        $region90: #{tpu_custom_call.1} parent=87 // pred_check_branch
          %2085 = sbr.rel (%p2083) target = $region92
        $region91: #{tpu_custom_call.1} parent=87 // pred_region
          %s2086 = sand.u32 %s352, 1
          %s2087 = scalar_lea.sflag [#allocation4], %s2086
          %s2088 = sand.u32 %s352, 1
          %s2089 = smul.addr %s2088, 8
          %s2090 = scalar_lea.vmem [#allocation5], %s2089
          %2092 = dma.done %s2087, 128
        $region92: #{tpu_custom_call.1} parent=87 // pred_fallthru
          _
      $region88: #{tpu_custom_call.1} parent=5 // pred_fallthru
        _
    $region6: #{tpu_custom_call.1} parent=1 // loop_footer
      %s28 = sadd.s32 1, %s24
    $region7: #{tpu_custom_call.1} parent=1 // loop_footer_branch
      %23 = sbr.rel target = $region3
    $region8: #{tpu_custom_call.1} parent=1 // loop_exit
      _
    %2093 = vsyncpa [#allocation3], 1
    %s2094 = scalar_lea.sflag [#allocation3], 1
    %2095 = vsyncpa %s2094, 1
    %2096 = vsyncpa [#allocation4], 1
    %s2097 = scalar_lea.sflag [#allocation4], 1
    %2098 = vsyncpa %s2097, 1

</llo_original>
